<compile_context>
chip_gen: v7x
topology: tpu7x:2x2x1
jax: 0.10.0
libtpu: 0.0.40
codegen_flags: <defaults>
</compile_context>

<pallas_src>
import functools

import numpy as np
import jax
import jax.numpy as jnp
from jax import lax
from jax.experimental import pallas as pl
from jax.experimental.pallas import tpu as pltpu


_BLOCK_B = 256  # samples per grid step (multiple of 128; bf16-friendly; VMEM-safe on v7x)


# ----------------------------- Pallas kernel --------------------------------

def _layernorm(z, gamma, beta, eps=1e-5):
    mu = jnp.mean(z, axis=-1, keepdims=True)
    var = jnp.mean((z - mu) * (z - mu), axis=-1, keepdims=True)
    return (z - mu) * lax.rsqrt(var + eps) * gamma + beta


def _fused_kernel(sp_ref, hp_ref,
                  w1e_ref, ws_ref, w2e_ref, wh_ref,
                  w1s_ref, w1h_ref, w2_ref, w3_ref,
                  b3_ref, vec_ref, out_ref):
    f32 = jnp.float32
    O1 = ws_ref.shape[0]             # conv1 out channels (8)
    P1 = w1e_ref.shape[1] // O1      # conv1 output positions (2)
    O2 = wh_ref.shape[0]             # conv2 out channels (16)
    P2 = w2e_ref.shape[1] // O2      # conv2 output positions (16)
    H = w2_ref.shape[0]              # MLP hidden size

    # Packed per-feature vector slab (row order fixed by prepare_kernel_params).
    b1c = vec_ref[0:1, 0:P1 * O1]
    bs = vec_ref[1:2, 0:ws_ref.shape[1]]
    b2c = vec_ref[2:3, 0:P2 * O2]
    bh = vec_ref[3:4, 0:wh_ref.shape[1]]
    b1 = vec_ref[4:5, 0:H]
    g1 = vec_ref[5:6, 0:H]
    be1 = vec_ref[6:7, 0:H]
    b2 = vec_ref[7:8, 0:H]
    g2 = vec_ref[8:9, 0:H]
    be2 = vec_ref[9:10, 0:H]

    # ---- state encoder: Conv1d folded into an (18,16) expanded weight -> ReLU -> max pool -> Linear
    s = jnp.dot(sp_ref[...], w1e_ref[...], preferred_element_type=f32) + b1c    # (TB, P1*O1)
    s = jnp.maximum(s, 0.0)
    sm = s[:, 0:O1]
    for p in range(1, P1):                       # MaxPool1d(2) on L=2 == max over positions
        sm = jnp.maximum(sm, s[:, p * O1:(p + 1) * O1])
    se = jnp.dot(sm, ws_ref[...], preferred_element_type=f32) + bs              # (TB, 6)

    # ---- hpoly encoder: Conv2d folded into an (800,256) expanded weight (bf16 operands,
    #      f32 accumulation) -> ReLU -> global max over the 16 positions -> Linear
    h = jnp.dot(hp_ref[...], w2e_ref[...], preferred_element_type=f32) + b2c    # (TB, P2*O2)
    h = jnp.maximum(h, 0.0)
    hm = h[:, 0:O2]
    for p in range(1, P2):                       # MaxPool2d(2) x2 on 4x4 == global max
        hm = jnp.maximum(hm, h[:, p * O2:(p + 1) * O2])
    he = jnp.dot(hm, wh_ref[...], preferred_element_type=f32) + bh              # (TB, 32)

    # ---- output MLP (concat(state, hpoly) realized as split-weight matmul)
    z = (jnp.dot(se, w1s_ref[...], preferred_element_type=f32)
         + jnp.dot(he, w1h_ref[...], preferred_element_type=f32) + b1)          # (TB, H)
    z = jnp.maximum(_layernorm(z, g1, be1), 0.0)   # Dropout -> identity (eval)
    z = jnp.dot(z, w2_ref[...], preferred_element_type=f32) + b2
    z = jnp.maximum(_layernorm(z, g2, be2), 0.0)

    # Final Linear(H, seg) computed with the output transposed to (seg, TB) so the
    # store is lane-dense (TB lanes) instead of a masked seg(=8)-lane store.
    zt = lax.dot_general(w3_ref[...], z, (((0,), (1,)), ((), ())),
                         preferred_element_type=f32) + b3_ref[...]              # (seg, TB)

    # Softplus(beta=2, threshold=20): (1/2)*log(1+exp(2x)) for 2x<=20 else x
    bz = 2.0 * zt
    soft = 0.5 * jnp.log(1.0 + jnp.exp(jnp.minimum(bz, 20.0)))
    out_ref[...] = jnp.where(bz > 20.0, zt, soft)


# ------------------------- parameter preparation -----------------------------

def _expand_conv1d(w, b, length, pad=1):
    # w: (O, C, K); returns (C*length, length*O) expanded weight and tiled bias.
    w = np.asarray(w, np.float32)
    b = np.asarray(b, np.float32)
    O, C, K = w.shape
    we = np.zeros((C * length, length * O), np.float32)
    for lo in range(length):
        for k in range(K):
            li = lo + k - pad
            if 0 <= li < length:
                we[li::length, lo * O:(lo + 1) * O] = w[:, :, k].T
    return jnp.asarray(we), jnp.asarray(np.tile(b, length))


def _expand_conv2d(w, b, height, width, pad=1):
    # w: (O, C, K, K); returns (C*H*W, H*W*O) expanded weight and tiled bias.
    w = np.asarray(w, np.float32)
    b = np.asarray(b, np.float32)
    O, C, K, _ = w.shape
    P = height * width
    we = np.zeros((C * P, P * O), np.float32)
    for po in range(P):
        yo, xo = divmod(po, width)
        for kh in range(K):
            for kw in range(K):
                yi, xi = yo + kh - pad, xo + kw - pad
                if 0 <= yi < height and 0 <= xi < width:
                    pi = yi * width + xi
                    we[pi::P, po * O:(po + 1) * O] = w[:, :, kh, kw].T
    return jnp.asarray(we), jnp.asarray(np.tile(b, P))


def _pack_vec_rows(rows, width):
    slab = np.zeros((len(rows), width), np.float32)
    for i, r in enumerate(rows):
        r = np.asarray(r, np.float32).reshape(-1)
        slab[i, :r.size] = r
    return jnp.asarray(slab)


def init_params(key, hidden_size=32, seg=8):
    """Logical (PyTorch-layout) parameters of the module."""
    ks = jax.random.split(key, 18)
    f32 = jnp.float32

    def kaiming(k, shape, fan_in):
        return jax.random.normal(k, shape, f32) * np.sqrt(2.0 / fan_in)

    def small(k, shape):
        return 0.1 * jax.random.normal(k, shape, f32)

    H = hidden_size
    p = {}
    p["wc1"] = kaiming(ks[0], (8, 9, 3), 9 * 3)          # Conv1d(9,8,k3)  (O,C,K)
    p["bc1"] = small(ks[1], (8,))
    p["ws"] = kaiming(ks[2], (8, 6), 8)                  # Linear(8,6) stored as (in,out)
    p["bs"] = small(ks[3], (6,))
    p["wc2"] = kaiming(ks[4], (16, 50, 3, 3), 50 * 9)    # Conv2d(50,16,k3) (O,C,kh,kw)
    p["bc2"] = small(ks[5], (16,))
    p["wh"] = kaiming(ks[6], (16, 32), 16)               # Linear(16,32) as (in,out)
    p["bh"] = small(ks[7], (32,))
    p["w1"] = kaiming(ks[8], (38, H), 38)                # Linear(38,H) as (in,out)
    p["b1"] = small(ks[9], (H,))
    p["g1"] = 1.0 + small(ks[10], (H,))
    p["be1"] = small(ks[11], (H,))
    p["w2"] = kaiming(ks[12], (H, H), H)
    p["b2"] = small(ks[13], (H,))
    p["g2"] = 1.0 + small(ks[14], (H,))
    p["be2"] = small(ks[15], (H,))
    p["w3"] = kaiming(ks[16], (H, seg), H)
    p["b3"] = small(ks[17], (seg,))
    return p


def prepare_kernel_params(lp, conv2_dtype=jnp.bfloat16):
    """Fold convs into expanded matmul weights and pack the per-feature vectors."""
    H = lp["w1"].shape[1]
    seg = lp["w3"].shape[1]
    w1e, b1c = _expand_conv1d(lp["wc1"], lp["bc1"], length=2)          # (18,16), (16,)
    w2e, b2c = _expand_conv2d(lp["wc2"], lp["bc2"], height=4, width=4)  # (800,256), (256,)
    width = max(256, H)
    vec = _pack_vec_rows([b1c, lp["bs"], b2c, lp["bh"],
                          lp["b1"], lp["g1"], lp["be1"],
                          lp["b2"], lp["g2"], lp["be2"]], width)
    return {
        "w1e": w1e,
        "ws": lp["ws"],
        "w2e": w2e.astype(conv2_dtype),
        "wh": lp["wh"],
        "w1s": lp["w1"][:6],
        "w1h": lp["w1"][6:],
        "w2": lp["w2"],
        "w3": lp["w3"],
        "b3c": jnp.asarray(np.asarray(lp["b3"], np.float32).reshape(seg, 1)),
        "vec": vec,
    }


# ------------------------------ JAX wrapper ----------------------------------

@functools.partial(jax.jit, static_argnames=("seg",))
def conv_mlp_minsnap_forward(stacked_state, stacked_hpolys, kparams, *, seg):
    """Returns tfs: (B, seg) float32 (the network output before the QP solver)."""
    B = stacked_state.shape[0]
    # Raw (non-inflated) flattened inputs; the conv taps live in the expanded weights.
    sp = stacked_state.astype(jnp.float32).reshape(B, -1)                 # (B, 18)
    hp = stacked_hpolys.astype(jnp.float32).reshape(B, -1)                # (B, 800)
    hp = hp.astype(jnp.bfloat16)                                          # halve HBM traffic

    TB = B if B <= _BLOCK_B else _BLOCK_B
    grid = (pl.cdiv(B, TB),)

    names = ["w1e", "ws", "w2e", "wh", "w1s", "w1h", "w2", "w3", "b3c", "vec"]
    weights = [kparams[n] for n in names]

    in_specs = ([pl.BlockSpec((TB, sp.shape[1]), lambda i: (i, 0)),
                 pl.BlockSpec((TB, hp.shape[1]), lambda i: (i, 0))]
                + [pl.BlockSpec(w.shape, lambda i: (0, 0)) for w in weights])

    out_t = pl.pallas_call(
        _fused_kernel,
        out_shape=jax.ShapeDtypeStruct((seg, B), jnp.float32),
        grid_spec=pltpu.PrefetchScalarGridSpec(
            num_scalar_prefetch=0,
            grid=grid,
            in_specs=in_specs,
            out_specs=pl.BlockSpec((seg, TB), lambda i: (0, i)),
        ),
        compiler_params=pltpu.CompilerParams(
            dimension_semantics=("parallel",)),   # lets v7x shard batch steps over 2 TCs
    )(sp, hp, *weights)

    return out_t.T                                                        # (B, seg)


# ------------------------------- reference -----------------------------------

def _im2col_1d(x, K=3):
    B, C, L = x.shape
    xp = jnp.pad(x, ((0, 0), (0, 0), (1, 1)))
    cols = jnp.stack([xp[:, :, k:k + L] for k in range(K)], axis=-1)      # (B, C, L, K)
    return jnp.transpose(cols, (0, 2, 1, 3)).reshape(B, L, C * K)


def _im2col_2d(x, K=3):
    B, C, H, W = x.shape
    xp = jnp.pad(x, ((0, 0), (0, 0), (1, 1), (1, 1)))
    taps = [xp[:, :, kh:kh + H, kw:kw + W] for kh in range(K) for kw in range(K)]
    cols = jnp.stack(taps, axis=-1)                                       # (B, C, H, W, K*K)
    return jnp.transpose(cols, (0, 2, 3, 1, 4)).reshape(B, H * W, C * K * K)


def _reference_forward(stacked_state, stacked_hpolys, lp, seg, match_kernel_bf16=True):
    """Pure-JAX reference mirroring the PyTorch module (eval mode).  Uses the logical
    conv weights via im2col (independently of the kernel's expanded-weight folding).
    `match_kernel_bf16` mirrors the kernel's bf16 quantization of the hpoly operand."""
    f32 = jnp.float32
    x = stacked_state.astype(f32)
    hpoly = stacked_hpolys.astype(f32)

    sp = _im2col_1d(x)                                    # (B, 2, 27), taps c-major
    wc1_mat = lp["wc1"].reshape(8, 27).T                  # (27, 8)
    s = jnp.maximum(sp @ wc1_mat + lp["bc1"], 0.0)        # (B, 2, 8)
    s = jnp.max(s, axis=1)                                # MaxPool1d(2) on L=2
    se = s @ lp["ws"] + lp["bs"]                          # (B, 6)

    hp = _im2col_2d(hpoly)                                # (B, 16, 450)
    wc2 = lp["wc2"]
    if match_kernel_bf16:
        hp = hp.astype(jnp.bfloat16).astype(f32)
        wc2 = wc2.astype(jnp.bfloat16).astype(f32)
    wc2_mat = wc2.reshape(16, 450).T                      # (450, 16)
    h = jnp.maximum(hp @ wc2_mat + lp["bc2"], 0.0)        # (B, 16, 16)
    h = jnp.max(h, axis=1)                                # MaxPool2d(2) x2 on 4x4
    he = h @ lp["wh"] + lp["bh"]                          # (B, 32)

    def ln(z, g, b):
        mu = z.mean(-1, keepdims=True)
        var = ((z - mu) ** 2).mean(-1, keepdims=True)
        return (z - mu) / jnp.sqrt(var + 1e-5) * g + b

    z = jnp.concatenate([se, he], axis=1) @ lp["w1"] + lp["b1"]
    z = jnp.maximum(ln(z, lp["g1"], lp["be1"]), 0.0)
    z = jnp.maximum(ln(z @ lp["w2"] + lp["b2"], lp["g2"], lp["be2"]), 0.0)
    z = z @ lp["w3"] + lp["b3"]
    bz = 2.0 * z
    return jnp.where(bz > 20.0, z, 0.5 * jnp.log(1.0 + jnp.exp(jnp.minimum(bz, 20.0))))


# --------------------------------- main ---------------------------------------

if __name__ == "__main__":
    SEG, HIDDEN = 8, 32
    key = jax.random.PRNGKey(0)
    k_data, _, k_params = jax.random.split(key, 3)

    logical = init_params(k_params, hidden_size=HIDDEN, seg=SEG)
    kparams = prepare_kernel_params(logical)

    # B=2: tiny batch -> single grid step with the whole batch resident in VMEM.
    # B=512: exercises the batched grid (2 steps of 256 samples).
    for B in (2, 512):
        ks, kh = jax.random.split(jax.random.fold_in(k_data, B))
        stacked_state = jax.random.normal(ks, (B, 9, 2), jnp.float32)        # NCL
        stacked_hpolys = jax.random.normal(kh, (B, 50, 4, 4), jnp.float32)   # NCHW

        tfs = conv_mlp_minsnap_forward(stacked_state, stacked_hpolys, kparams, seg=SEG)
        tfs = jax.block_until_ready(tfs)

        ref = _reference_forward(stacked_state, stacked_hpolys, logical, SEG)
        assert tfs.shape == (B, SEG) and tfs.dtype == jnp.float32
        assert jnp.allclose(tfs, ref, atol=2e-3, rtol=2e-3), "mismatch vs reference"

    print("KERNEL_OK")
</pallas_src>

<mosaic_0001>
module attributes {stable_mosaic.version = 11 : i64} {
  func.func @_fused_kernel(%arg0: i32, %arg1: memref<2x18xf32, #tpu.memory_space<vmem>>, %arg2: memref<2x800xbf16, #tpu.memory_space<vmem>>, %arg3: memref<18x16xf32, #tpu.memory_space<vmem>>, %arg4: memref<8x6xf32, #tpu.memory_space<vmem>>, %arg5: memref<800x256xbf16, #tpu.memory_space<vmem>>, %arg6: memref<16x32xf32, #tpu.memory_space<vmem>>, %arg7: memref<6x32xf32, #tpu.memory_space<vmem>>, %arg8: memref<32x32xf32, #tpu.memory_space<vmem>>, %arg9: memref<32x32xf32, #tpu.memory_space<vmem>>, %arg10: memref<32x8xf32, #tpu.memory_space<vmem>>, %arg11: memref<8x1xf32, #tpu.memory_space<vmem>>, %arg12: memref<10x256xf32, #tpu.memory_space<vmem>>, %arg13: memref<8x2xf32, #tpu.memory_space<vmem>>) attributes {dimension_semantics = [#tpu.dimension_semantics<parallel>], iteration_bounds = array<i64: 1>, scalar_prefetch = 0 : i64, scratch_operands = 0 : i64, tpu.core_type = #tpu.core_type<tc>, window_params = [{transform_indices = @transform_0, window_bounds = array<i64: 2, 18>}, {transform_indices = @transform_1, window_bounds = array<i64: 2, 800>}, {pipeline_mode = #tpu.pipeline_mode<synchronous>, transform_indices = @transform_2, window_bounds = array<i64: 18, 16>}, {pipeline_mode = #tpu.pipeline_mode<synchronous>, transform_indices = @transform_3, window_bounds = array<i64: 8, 6>}, {pipeline_mode = #tpu.pipeline_mode<synchronous>, transform_indices = @transform_4, window_bounds = array<i64: 800, 256>}, {pipeline_mode = #tpu.pipeline_mode<synchronous>, transform_indices = @transform_5, window_bounds = array<i64: 16, 32>}, {pipeline_mode = #tpu.pipeline_mode<synchronous>, transform_indices = @transform_6, window_bounds = array<i64: 6, 32>}, {pipeline_mode = #tpu.pipeline_mode<synchronous>, transform_indices = @transform_7, window_bounds = array<i64: 32, 32>}, {pipeline_mode = #tpu.pipeline_mode<synchronous>, transform_indices = @transform_8, window_bounds = array<i64: 32, 32>}, {pipeline_mode = #tpu.pipeline_mode<synchronous>, transform_indices = @transform_9, window_bounds = array<i64: 32, 8>}, {pipeline_mode = #tpu.pipeline_mode<synchronous>, transform_indices = @transform_10, window_bounds = array<i64: 8, 1>}, {pipeline_mode = #tpu.pipeline_mode<synchronous>, transform_indices = @transform_11, window_bounds = array<i64: 10, 256>}, {transform_indices = @transform_12, window_bounds = array<i64: 8, 2>}]} {
    %c0 = arith.constant 0 : index
    %c0_0 = arith.constant 0 : index
    %0 = vector.load %arg12[%c0, %c0_0] : memref<10x256xf32, #tpu.memory_space<vmem>>, vector<1x16xf32>
    %c1 = arith.constant 1 : index
    %c0_1 = arith.constant 0 : index
    %1 = vector.load %arg12[%c1, %c0_1] : memref<10x256xf32, #tpu.memory_space<vmem>>, vector<1x6xf32>
    %c2 = arith.constant 2 : index
    %c0_2 = arith.constant 0 : index
    %2 = vector.load %arg12[%c2, %c0_2] : memref<10x256xf32, #tpu.memory_space<vmem>>, vector<1x256xf32>
    %c3 = arith.constant 3 : index
    %c0_3 = arith.constant 0 : index
    %3 = vector.load %arg12[%c3, %c0_3] : memref<10x256xf32, #tpu.memory_space<vmem>>, vector<1x32xf32>
    %c4 = arith.constant 4 : index
    %c0_4 = arith.constant 0 : index
    %4 = vector.load %arg12[%c4, %c0_4] : memref<10x256xf32, #tpu.memory_space<vmem>>, vector<1x32xf32>
    %c5 = arith.constant 5 : index
    %c0_5 = arith.constant 0 : index
    %5 = vector.load %arg12[%c5, %c0_5] : memref<10x256xf32, #tpu.memory_space<vmem>>, vector<1x32xf32>
    %c6 = arith.constant 6 : index
    %c0_6 = arith.constant 0 : index
    %6 = vector.load %arg12[%c6, %c0_6] : memref<10x256xf32, #tpu.memory_space<vmem>>, vector<1x32xf32>
    %c7 = arith.constant 7 : index
    %c0_7 = arith.constant 0 : index
    %7 = vector.load %arg12[%c7, %c0_7] : memref<10x256xf32, #tpu.memory_space<vmem>>, vector<1x32xf32>
    %c8 = arith.constant 8 : index
    %c0_8 = arith.constant 0 : index
    %8 = vector.load %arg12[%c8, %c0_8] : memref<10x256xf32, #tpu.memory_space<vmem>>, vector<1x32xf32>
    %c9 = arith.constant 9 : index
    %c0_9 = arith.constant 0 : index
    %9 = vector.load %arg12[%c9, %c0_9] : memref<10x256xf32, #tpu.memory_space<vmem>>, vector<1x32xf32>
    %c0_10 = arith.constant 0 : index
    %c0_11 = arith.constant 0 : index
    %10 = vector.load %arg1[%c0_10, %c0_11] : memref<2x18xf32, #tpu.memory_space<vmem>>, vector<2x18xf32>
    %c0_12 = arith.constant 0 : index
    %c0_13 = arith.constant 0 : index
    %11 = vector.load %arg3[%c0_12, %c0_13] : memref<18x16xf32, #tpu.memory_space<vmem>>, vector<18x16xf32>
    %cst = arith.constant dense<0.000000e+00> : vector<2x16xf32>
    %12 = tpu.matmul %10, %11, %cst {dimension_numbers = #tpu.dot_dimension_numbers<[1], [0], [0], [1], [0, 0, 1, 1], [], []>} : vector<2x18xf32>, vector<18x16xf32>, vector<2x16xf32> -> vector<2x16xf32>
    %13 = vector.broadcast %0 : vector<1x16xf32> to vector<2x16xf32>
    %14 = arith.addf %12, %13 : vector<2x16xf32>
    %cst_14 = arith.constant 0.000000e+00 : f32
    %15 = vector.broadcast %cst_14 : f32 to vector<2x16xf32>
    %16 = arith.maximumf %14, %15 : vector<2x16xf32>
    %17 = vector.extract_strided_slice %16 {offsets = [0, 0], sizes = [2, 8], strides = [1, 1]} : vector<2x16xf32> to vector<2x8xf32>
    %18 = vector.extract_strided_slice %16 {offsets = [0, 8], sizes = [2, 8], strides = [1, 1]} : vector<2x16xf32> to vector<2x8xf32>
    %19 = arith.maximumf %17, %18 : vector<2x8xf32>
    %c0_15 = arith.constant 0 : index
    %c0_16 = arith.constant 0 : index
    %20 = vector.load %arg4[%c0_15, %c0_16] : memref<8x6xf32, #tpu.memory_space<vmem>>, vector<8x6xf32>
    %cst_17 = arith.constant dense<0.000000e+00> : vector<2x6xf32>
    %21 = tpu.matmul %19, %20, %cst_17 {dimension_numbers = #tpu.dot_dimension_numbers<[1], [0], [0], [1], [0, 0, 1, 1], [], []>} : vector<2x8xf32>, vector<8x6xf32>, vector<2x6xf32> -> vector<2x6xf32>
    %22 = vector.broadcast %1 : vector<1x6xf32> to vector<2x6xf32>
    %23 = arith.addf %21, %22 : vector<2x6xf32>
    %c0_18 = arith.constant 0 : index
    %c0_19 = arith.constant 0 : index
    %24 = vector.load %arg2[%c0_18, %c0_19] : memref<2x800xbf16, #tpu.memory_space<vmem>>, vector<2x800xbf16>
    %c0_20 = arith.constant 0 : index
    %c0_21 = arith.constant 0 : index
    %25 = vector.load %arg5[%c0_20, %c0_21] : memref<800x256xbf16, #tpu.memory_space<vmem>>, vector<800x256xbf16>
    %cst_22 = arith.constant dense<0.000000e+00> : vector<2x256xf32>
    %26 = tpu.matmul %24, %25, %cst_22 {dimension_numbers = #tpu.dot_dimension_numbers<[1], [0], [0], [1], [0, 0, 1, 1], [], []>} : vector<2x800xbf16>, vector<800x256xbf16>, vector<2x256xf32> -> vector<2x256xf32>
    %27 = vector.broadcast %2 : vector<1x256xf32> to vector<2x256xf32>
    %28 = arith.addf %26, %27 : vector<2x256xf32>
    %cst_23 = arith.constant 0.000000e+00 : f32
    %29 = vector.broadcast %cst_23 : f32 to vector<2x256xf32>
    %30 = arith.maximumf %28, %29 : vector<2x256xf32>
    %31 = vector.extract_strided_slice %30 {offsets = [0, 0], sizes = [2, 16], strides = [1, 1]} : vector<2x256xf32> to vector<2x16xf32>
    %32 = vector.extract_strided_slice %30 {offsets = [0, 16], sizes = [2, 16], strides = [1, 1]} : vector<2x256xf32> to vector<2x16xf32>
    %33 = arith.maximumf %31, %32 : vector<2x16xf32>
    %34 = vector.extract_strided_slice %30 {offsets = [0, 32], sizes = [2, 16], strides = [1, 1]} : vector<2x256xf32> to vector<2x16xf32>
    %35 = arith.maximumf %33, %34 : vector<2x16xf32>
    %36 = vector.extract_strided_slice %30 {offsets = [0, 48], sizes = [2, 16], strides = [1, 1]} : vector<2x256xf32> to vector<2x16xf32>
    %37 = arith.maximumf %35, %36 : vector<2x16xf32>
    %38 = vector.extract_strided_slice %30 {offsets = [0, 64], sizes = [2, 16], strides = [1, 1]} : vector<2x256xf32> to vector<2x16xf32>
    %39 = arith.maximumf %37, %38 : vector<2x16xf32>
    %40 = vector.extract_strided_slice %30 {offsets = [0, 80], sizes = [2, 16], strides = [1, 1]} : vector<2x256xf32> to vector<2x16xf32>
    %41 = arith.maximumf %39, %40 : vector<2x16xf32>
    %42 = vector.extract_strided_slice %30 {offsets = [0, 96], sizes = [2, 16], strides = [1, 1]} : vector<2x256xf32> to vector<2x16xf32>
    %43 = arith.maximumf %41, %42 : vector<2x16xf32>
    %44 = vector.extract_strided_slice %30 {offsets = [0, 112], sizes = [2, 16], strides = [1, 1]} : vector<2x256xf32> to vector<2x16xf32>
    %45 = arith.maximumf %43, %44 : vector<2x16xf32>
    %46 = vector.extract_strided_slice %30 {offsets = [0, 128], sizes = [2, 16], strides = [1, 1]} : vector<2x256xf32> to vector<2x16xf32>
    %47 = arith.maximumf %45, %46 : vector<2x16xf32>
    %48 = vector.extract_strided_slice %30 {offsets = [0, 144], sizes = [2, 16], strides = [1, 1]} : vector<2x256xf32> to vector<2x16xf32>
    %49 = arith.maximumf %47, %48 : vector<2x16xf32>
    %50 = vector.extract_strided_slice %30 {offsets = [0, 160], sizes = [2, 16], strides = [1, 1]} : vector<2x256xf32> to vector<2x16xf32>
    %51 = arith.maximumf %49, %50 : vector<2x16xf32>
    %52 = vector.extract_strided_slice %30 {offsets = [0, 176], sizes = [2, 16], strides = [1, 1]} : vector<2x256xf32> to vector<2x16xf32>
    %53 = arith.maximumf %51, %52 : vector<2x16xf32>
    %54 = vector.extract_strided_slice %30 {offsets = [0, 192], sizes = [2, 16], strides = [1, 1]} : vector<2x256xf32> to vector<2x16xf32>
    %55 = arith.maximumf %53, %54 : vector<2x16xf32>
    %56 = vector.extract_strided_slice %30 {offsets = [0, 208], sizes = [2, 16], strides = [1, 1]} : vector<2x256xf32> to vector<2x16xf32>
    %57 = arith.maximumf %55, %56 : vector<2x16xf32>
    %58 = vector.extract_strided_slice %30 {offsets = [0, 224], sizes = [2, 16], strides = [1, 1]} : vector<2x256xf32> to vector<2x16xf32>
    %59 = arith.maximumf %57, %58 : vector<2x16xf32>
    %60 = vector.extract_strided_slice %30 {offsets = [0, 240], sizes = [2, 16], strides = [1, 1]} : vector<2x256xf32> to vector<2x16xf32>
    %61 = arith.maximumf %59, %60 : vector<2x16xf32>
    %c0_24 = arith.constant 0 : index
    %c0_25 = arith.constant 0 : index
    %62 = vector.load %arg6[%c0_24, %c0_25] : memref<16x32xf32, #tpu.memory_space<vmem>>, vector<16x32xf32>
    %cst_26 = arith.constant dense<0.000000e+00> : vector<2x32xf32>
    %63 = tpu.matmul %61, %62, %cst_26 {dimension_numbers = #tpu.dot_dimension_numbers<[1], [0], [0], [1], [0, 0, 1, 1], [], []>} : vector<2x16xf32>, vector<16x32xf32>, vector<2x32xf32> -> vector<2x32xf32>
    %64 = vector.broadcast %3 : vector<1x32xf32> to vector<2x32xf32>
    %65 = arith.addf %63, %64 : vector<2x32xf32>
    %c0_27 = arith.constant 0 : index
    %c0_28 = arith.constant 0 : index
    %66 = vector.load %arg7[%c0_27, %c0_28] : memref<6x32xf32, #tpu.memory_space<vmem>>, vector<6x32xf32>
    %cst_29 = arith.constant dense<0.000000e+00> : vector<2x32xf32>
    %67 = tpu.matmul %23, %66, %cst_29 {dimension_numbers = #tpu.dot_dimension_numbers<[1], [0], [0], [1], [0, 0, 1, 1], [], []>} : vector<2x6xf32>, vector<6x32xf32>, vector<2x32xf32> -> vector<2x32xf32>
    %c0_30 = arith.constant 0 : index
    %c0_31 = arith.constant 0 : index
    %68 = vector.load %arg8[%c0_30, %c0_31] : memref<32x32xf32, #tpu.memory_space<vmem>>, vector<32x32xf32>
    %cst_32 = arith.constant dense<0.000000e+00> : vector<2x32xf32>
    %69 = tpu.matmul %65, %68, %cst_32 {dimension_numbers = #tpu.dot_dimension_numbers<[1], [0], [0], [1], [0, 0, 1, 1], [], []>} : vector<2x32xf32>, vector<32x32xf32>, vector<2x32xf32> -> vector<2x32xf32>
    %70 = arith.addf %67, %69 : vector<2x32xf32>
    %71 = vector.broadcast %4 : vector<1x32xf32> to vector<2x32xf32>
    %72 = arith.addf %70, %71 : vector<2x32xf32>
    %cst_33 = arith.constant dense<0.000000e+00> : vector<2xf32>
    %73 = vector.multi_reduction <add>, %72, %cst_33 [1] : vector<2x32xf32> to vector<2xf32>
    %74 = vector.shape_cast %73 : vector<2xf32> to vector<2x1xf32>
    %cst_34 = arith.constant 3.200000e+01 : f32
    %75 = vector.broadcast %cst_34 : f32 to vector<2x1xf32>
    %76 = arith.divf %74, %75 : vector<2x1xf32>
    %77 = vector.broadcast %76 : vector<2x1xf32> to vector<2x32xf32>
    %78 = arith.subf %72, %77 : vector<2x32xf32>
    %79 = vector.broadcast %76 : vector<2x1xf32> to vector<2x32xf32>
    %80 = arith.subf %72, %79 : vector<2x32xf32>
    %81 = arith.mulf %78, %80 : vector<2x32xf32>
    %cst_35 = arith.constant dense<0.000000e+00> : vector<2xf32>
    %82 = vector.multi_reduction <add>, %81, %cst_35 [1] : vector<2x32xf32> to vector<2xf32>
    %83 = vector.shape_cast %82 : vector<2xf32> to vector<2x1xf32>
    %cst_36 = arith.constant 3.200000e+01 : f32
    %84 = vector.broadcast %cst_36 : f32 to vector<2x1xf32>
    %85 = arith.divf %83, %84 : vector<2x1xf32>
    %86 = vector.broadcast %76 : vector<2x1xf32> to vector<2x32xf32>
    %87 = arith.subf %72, %86 : vector<2x32xf32>
    %cst_37 = arith.constant 9.99999974E-6 : f32
    %88 = vector.broadcast %cst_37 : f32 to vector<2x1xf32>
    %89 = arith.addf %85, %88 : vector<2x1xf32>
    %90 = math.rsqrt %89 : vector<2x1xf32>
    %91 = vector.broadcast %90 : vector<2x1xf32> to vector<2x32xf32>
    %92 = arith.mulf %87, %91 : vector<2x32xf32>
    %93 = vector.broadcast %5 : vector<1x32xf32> to vector<2x32xf32>
    %94 = arith.mulf %92, %93 : vector<2x32xf32>
    %95 = vector.broadcast %6 : vector<1x32xf32> to vector<2x32xf32>
    %96 = arith.addf %94, %95 : vector<2x32xf32>
    %cst_38 = arith.constant 0.000000e+00 : f32
    %97 = vector.broadcast %cst_38 : f32 to vector<2x32xf32>
    %98 = arith.maximumf %96, %97 : vector<2x32xf32>
    %c0_39 = arith.constant 0 : index
    %c0_40 = arith.constant 0 : index
    %99 = vector.load %arg9[%c0_39, %c0_40] : memref<32x32xf32, #tpu.memory_space<vmem>>, vector<32x32xf32>
    %cst_41 = arith.constant dense<0.000000e+00> : vector<2x32xf32>
    %100 = tpu.matmul %98, %99, %cst_41 {dimension_numbers = #tpu.dot_dimension_numbers<[1], [0], [0], [1], [0, 0, 1, 1], [], []>} : vector<2x32xf32>, vector<32x32xf32>, vector<2x32xf32> -> vector<2x32xf32>
    %101 = vector.broadcast %7 : vector<1x32xf32> to vector<2x32xf32>
    %102 = arith.addf %100, %101 : vector<2x32xf32>
    %cst_42 = arith.constant dense<0.000000e+00> : vector<2xf32>
    %103 = vector.multi_reduction <add>, %102, %cst_42 [1] : vector<2x32xf32> to vector<2xf32>
    %104 = vector.shape_cast %103 : vector<2xf32> to vector<2x1xf32>
    %cst_43 = arith.constant 3.200000e+01 : f32
    %105 = vector.broadcast %cst_43 : f32 to vector<2x1xf32>
    %106 = arith.divf %104, %105 : vector<2x1xf32>
    %107 = vector.broadcast %106 : vector<2x1xf32> to vector<2x32xf32>
    %108 = arith.subf %102, %107 : vector<2x32xf32>
    %109 = vector.broadcast %106 : vector<2x1xf32> to vector<2x32xf32>
    %110 = arith.subf %102, %109 : vector<2x32xf32>
    %111 = arith.mulf %108, %110 : vector<2x32xf32>
    %cst_44 = arith.constant dense<0.000000e+00> : vector<2xf32>
    %112 = vector.multi_reduction <add>, %111, %cst_44 [1] : vector<2x32xf32> to vector<2xf32>
    %113 = vector.shape_cast %112 : vector<2xf32> to vector<2x1xf32>
    %cst_45 = arith.constant 3.200000e+01 : f32
    %114 = vector.broadcast %cst_45 : f32 to vector<2x1xf32>
    %115 = arith.divf %113, %114 : vector<2x1xf32>
    %116 = vector.broadcast %106 : vector<2x1xf32> to vector<2x32xf32>
    %117 = arith.subf %102, %116 : vector<2x32xf32>
    %cst_46 = arith.constant 9.99999974E-6 : f32
    %118 = vector.broadcast %cst_46 : f32 to vector<2x1xf32>
    %119 = arith.addf %115, %118 : vector<2x1xf32>
    %120 = math.rsqrt %119 : vector<2x1xf32>
    %121 = vector.broadcast %120 : vector<2x1xf32> to vector<2x32xf32>
    %122 = arith.mulf %117, %121 : vector<2x32xf32>
    %123 = vector.broadcast %8 : vector<1x32xf32> to vector<2x32xf32>
    %124 = arith.mulf %122, %123 : vector<2x32xf32>
    %125 = vector.broadcast %9 : vector<1x32xf32> to vector<2x32xf32>
    %126 = arith.addf %124, %125 : vector<2x32xf32>
    %cst_47 = arith.constant 0.000000e+00 : f32
    %127 = vector.broadcast %cst_47 : f32 to vector<2x32xf32>
    %128 = arith.maximumf %126, %127 : vector<2x32xf32>
    %c0_48 = arith.constant 0 : index
    %c0_49 = arith.constant 0 : index
    %129 = vector.load %arg10[%c0_48, %c0_49] : memref<32x8xf32, #tpu.memory_space<vmem>>, vector<32x8xf32>
    %cst_50 = arith.constant dense<0.000000e+00> : vector<8x2xf32>
    %130 = tpu.matmul %129, %128, %cst_50 {dimension_numbers = #tpu.dot_dimension_numbers<[0], [1], [1], [0], [0, 1, 1, 0], [], []>} : vector<32x8xf32>, vector<2x32xf32>, vector<8x2xf32> -> vector<8x2xf32>
    %c0_51 = arith.constant 0 : index
    %c0_52 = arith.constant 0 : index
    %131 = vector.load %arg11[%c0_51, %c0_52] : memref<8x1xf32, #tpu.memory_space<vmem>>, vector<8x1xf32>
    %132 = vector.broadcast %131 : vector<8x1xf32> to vector<8x2xf32>
    %133 = arith.addf %130, %132 : vector<8x2xf32>
    %cst_53 = arith.constant 2.000000e+00 : f32
    %134 = vector.broadcast %cst_53 : f32 to vector<8x2xf32>
    %135 = arith.mulf %134, %133 : vector<8x2xf32>
    %cst_54 = arith.constant 2.000000e+01 : f32
    %136 = vector.broadcast %cst_54 : f32 to vector<8x2xf32>
    %137 = arith.minimumf %135, %136 : vector<8x2xf32>
    %138 = math.exp %137 : vector<8x2xf32>
    %cst_55 = arith.constant 1.000000e+00 : f32
    %139 = vector.broadcast %cst_55 : f32 to vector<8x2xf32>
    %140 = arith.addf %139, %138 : vector<8x2xf32>
    %141 = math.log %140 : vector<8x2xf32>
    %cst_56 = arith.constant 5.000000e-01 : f32
    %142 = vector.broadcast %cst_56 : f32 to vector<8x2xf32>
    %143 = arith.mulf %142, %141 : vector<8x2xf32>
    %cst_57 = arith.constant 2.000000e+01 : f32
    %144 = vector.broadcast %cst_57 : f32 to vector<8x2xf32>
    %145 = arith.cmpf ogt, %135, %144 : vector<8x2xf32>
    %146 = arith.select %145, %133, %143 : vector<8x2xi1>, vector<8x2xf32>
    %c0_58 = arith.constant 0 : index
    %c0_59 = arith.constant 0 : index
    %147 = vector.load %arg13[%c0_58, %c0_59] : memref<8x2xf32, #tpu.memory_space<vmem>>, vector<8x2xf32>
    tpu.vector_store %arg13[%c0_58, %c0_59], %146 {strides = array<i32>} : memref<8x2xf32, #tpu.memory_space<vmem>>, vector<8x2xf32>,
    return
  }
  func.func @transform_0(%arg0: i32) -> (i32, i32) {
    %c0_i32 = arith.constant 0 : i32
    %c0_i32_0 = arith.constant 0 : i32
    return %arg0, %c0_i32 : i32, i32
  }
  func.func @transform_1(%arg0: i32) -> (i32, i32) {
    %c0_i32 = arith.constant 0 : i32
    %c0_i32_0 = arith.constant 0 : i32
    return %arg0, %c0_i32 : i32, i32
  }
  func.func @transform_2(%arg0: i32) -> (i32, i32) {
    %c0_i32 = arith.constant 0 : i32
    %c0_i32_0 = arith.constant 0 : i32
    %c0_i32_1 = arith.constant 0 : i32
    return %c0_i32, %c0_i32_0 : i32, i32
  }
  func.func @transform_3(%arg0: i32) -> (i32, i32) {
    %c0_i32 = arith.constant 0 : i32
    %c0_i32_0 = arith.constant 0 : i32
    %c0_i32_1 = arith.constant 0 : i32
    return %c0_i32, %c0_i32_0 : i32, i32
  }
  func.func @transform_4(%arg0: i32) -> (i32, i32) {
    %c0_i32 = arith.constant 0 : i32
    %c0_i32_0 = arith.constant 0 : i32
    %c0_i32_1 = arith.constant 0 : i32
    return %c0_i32, %c0_i32_0 : i32, i32
  }
  func.func @transform_5(%arg0: i32) -> (i32, i32) {
    %c0_i32 = arith.constant 0 : i32
    %c0_i32_0 = arith.constant 0 : i32
    %c0_i32_1 = arith.constant 0 : i32
    return %c0_i32, %c0_i32_0 : i32, i32
  }
  func.func @transform_6(%arg0: i32) -> (i32, i32) {
    %c0_i32 = arith.constant 0 : i32
    %c0_i32_0 = arith.constant 0 : i32
    %c0_i32_1 = arith.constant 0 : i32
    return %c0_i32, %c0_i32_0 : i32, i32
  }
  func.func @transform_7(%arg0: i32) -> (i32, i32) {
    %c0_i32 = arith.constant 0 : i32
    %c0_i32_0 = arith.constant 0 : i32
    %c0_i32_1 = arith.constant 0 : i32
    return %c0_i32, %c0_i32_0 : i32, i32
  }
  func.func @transform_8(%arg0: i32) -> (i32, i32) {
    %c0_i32 = arith.constant 0 : i32
    %c0_i32_0 = arith.constant 0 : i32
    %c0_i32_1 = arith.constant 0 : i32
    return %c0_i32, %c0_i32_0 : i32, i32
  }
  func.func @transform_9(%arg0: i32) -> (i32, i32) {
    %c0_i32 = arith.constant 0 : i32
    %c0_i32_0 = arith.constant 0 : i32
    %c0_i32_1 = arith.constant 0 : i32
    return %c0_i32, %c0_i32_0 : i32, i32
  }
  func.func @transform_10(%arg0: i32) -> (i32, i32) {
    %c0_i32 = arith.constant 0 : i32
    %c0_i32_0 = arith.constant 0 : i32
    %c0_i32_1 = arith.constant 0 : i32
    return %c0_i32, %c0_i32_0 : i32, i32
  }
  func.func @transform_11(%arg0: i32) -> (i32, i32) {
    %c0_i32 = arith.constant 0 : i32
    %c0_i32_0 = arith.constant 0 : i32
    %c0_i32_1 = arith.constant 0 : i32
    return %c0_i32, %c0_i32_0 : i32, i32
  }
  func.func @transform_12(%arg0: i32) -> (i32, i32) {
    %c0_i32 = arith.constant 0 : i32
    %c0_i32_0 = arith.constant 0 : i32
    return %c0_i32, %arg0 : i32, i32
  }
}

</mosaic_0001>

<llo_original>
// kernel: conv_mlp_minsnap_forward.1
$region0: #{conv_mlp_minsnap_forward.1}
  #allocation0 [shape = 'u32[]', space=smem, size = 0x4, offset = 0x4, fixed_abs, tag = 'smem constant byte address 0x4 - core index']
  #allocation1 [shape = 'u32[144,128]{1,0:T(1,128)}', space=vmem, size = 0x12000, scoped, tag = 'internal scratch']
  %s0 = inlined_call_operand.vmem [shape: f32[2,18], index: 0, kind: input, shape index: {}]
  %s1 = inlined_call_operand.vmem [shape: bf16[2,800], index: 1, kind: input, shape index: {}]
  %s2 = inlined_call_operand.vmem [shape: f32[18,16], index: 2, kind: input, shape index: {}]
  %s3 = inlined_call_operand.vmem [shape: f32[8,6], index: 3, kind: input, shape index: {}]
  %s4 = inlined_call_operand.hbm [shape: bf16[800,256], index: 4, kind: input, shape index: {}]
  %s5 = inlined_call_operand.vmem [shape: f32[16,32], index: 5, kind: input, shape index: {}]
  %s6 = inlined_call_operand.vmem [shape: f32[6,32], index: 6, kind: input, shape index: {}]
  %s7 = inlined_call_operand.vmem [shape: f32[32,32], index: 7, kind: input, shape index: {}]
  %s8 = inlined_call_operand.vmem [shape: f32[32,32], index: 8, kind: input, shape index: {}]
  %s9 = inlined_call_operand.vmem [shape: f32[32,8], index: 9, kind: input, shape index: {}]
  %s10 = inlined_call_operand.vmem [shape: f32[8,1], index: 10, kind: input, shape index: {}]
  %s11 = inlined_call_operand.vmem [shape: f32[10,256], index: 11, kind: input, shape index: {}]
  %s12 = inlined_call_operand.vmem [shape: f32[8,2], index: 12, kind: output, shape index: {}]
  %s13 = sld [smem:[#allocation0]]
  $region62: #{conv_mlp_minsnap_forward.1} parent=0
    _
  %s15 = ssub.s32 1, %s13
  %s16 = scalar_select 0, %s15, %s13
  $region1: #{conv_mlp_minsnap_forward.1} parent=0
    #allocation2 [shape = 'u8[409600]{0}', space=vmem, size = 0x64000, scoped, tag = 'input window, operand 4, single buffered']
    #allocation3 [shape = 's32[1]{0}', space=sflag, size = 0x4, scoped, tag = 'scoped memory for conv_mlp_minsnap_forward.1']
    %17 = vsyncpa [#allocation3], 0
    // Predicated region
    $region2: #{conv_mlp_minsnap_forward.1} parent=1 // pred_check
      _
    $region3: #{conv_mlp_minsnap_forward.1} parent=1 // pred_check_branch
      %19 = sbr.rel (0) target = $region5
    $region4: #{conv_mlp_minsnap_forward.1} parent=1 // pred_region
      _
    $region5: #{conv_mlp_minsnap_forward.1} parent=1 // pred_fallthru
      _
    // Predicated region
    $region6: #{conv_mlp_minsnap_forward.1} parent=1 // pred_check
      _
    $region7: #{conv_mlp_minsnap_forward.1} parent=1 // pred_check_branch
      %21 = sbr.rel (0) target = $region9
    $region8: #{conv_mlp_minsnap_forward.1} parent=1 // pred_region
      _
    $region9: #{conv_mlp_minsnap_forward.1} parent=1 // pred_fallthru
      _
    // Predicated region
    $region10: #{conv_mlp_minsnap_forward.1} parent=1 // pred_check
      _
    $region11: #{conv_mlp_minsnap_forward.1} parent=1 // pred_check_branch
      %23 = sbr.rel (0) target = $region13
    $region12: #{conv_mlp_minsnap_forward.1} parent=1 // pred_region
      _
    $region13: #{conv_mlp_minsnap_forward.1} parent=1 // pred_fallthru
      _
    // Predicated region
    $region14: #{conv_mlp_minsnap_forward.1} parent=1 // pred_check
      _
    $region15: #{conv_mlp_minsnap_forward.1} parent=1 // pred_check_branch
      %25 = sbr.rel (0) target = $region17
    $region16: #{conv_mlp_minsnap_forward.1} parent=1 // pred_region
      _
    $region17: #{conv_mlp_minsnap_forward.1} parent=1 // pred_fallthru
      _
    // Predicated region
    $region18: #{conv_mlp_minsnap_forward.1} parent=1 // pred_check
      _
    $region19: #{conv_mlp_minsnap_forward.1} parent=1 // pred_check_branch
      %27 = sbr.rel (0) target = $region21
    $region20: #{conv_mlp_minsnap_forward.1} parent=1 // pred_region
      %s29 = ssub.s32 12800, 12800
      %30 = vsyncadd [#allocation3], %s29
      %s31 = sshll.u32 [#allocation2], 4
      %s32 = int_to_ptr.vmem [resolvable:$true] %s31
      %37 = dma.hbm_to_vmem [thread:$0]  %s4, 12800, %s32, [#allocation3], 128, 128, 8
    $region21: #{conv_mlp_minsnap_forward.1} parent=1 // pred_fallthru
      _
    // Predicated region
    $region22: #{conv_mlp_minsnap_forward.1} parent=1 // pred_check
      _
    $region23: #{conv_mlp_minsnap_forward.1} parent=1 // pred_check_branch
      %39 = sbr.rel (0) target = $region25
    $region24: #{conv_mlp_minsnap_forward.1} parent=1 // pred_region
      _
    $region25: #{conv_mlp_minsnap_forward.1} parent=1 // pred_fallthru
      _
    // Predicated region
    $region26: #{conv_mlp_minsnap_forward.1} parent=1 // pred_check
      _
    $region27: #{conv_mlp_minsnap_forward.1} parent=1 // pred_check_branch
      %41 = sbr.rel (0) target = $region29
    $region28: #{conv_mlp_minsnap_forward.1} parent=1 // pred_region
      _
    $region29: #{conv_mlp_minsnap_forward.1} parent=1 // pred_fallthru
      _
    // Predicated region
    $region30: #{conv_mlp_minsnap_forward.1} parent=1 // pred_check
      _
    $region31: #{conv_mlp_minsnap_forward.1} parent=1 // pred_check_branch
      %43 = sbr.rel (0) target = $region33
    $region32: #{conv_mlp_minsnap_forward.1} parent=1 // pred_region
      _
    $region33: #{conv_mlp_minsnap_forward.1} parent=1 // pred_fallthru
      _
    // Predicated region
    $region34: #{conv_mlp_minsnap_forward.1} parent=1 // pred_check
      _
    $region35: #{conv_mlp_minsnap_forward.1} parent=1 // pred_check_branch
      %45 = sbr.rel (0) target = $region37
    $region36: #{conv_mlp_minsnap_forward.1} parent=1 // pred_region
      _
    $region37: #{conv_mlp_minsnap_forward.1} parent=1 // pred_fallthru
      _
    // Predicated region
    $region38: #{conv_mlp_minsnap_forward.1} parent=1 // pred_check
      _
    $region39: #{conv_mlp_minsnap_forward.1} parent=1 // pred_check_branch
      %47 = sbr.rel (0) target = $region41
    $region40: #{conv_mlp_minsnap_forward.1} parent=1 // pred_region
      _
    $region41: #{conv_mlp_minsnap_forward.1} parent=1 // pred_fallthru
      _
    // Predicated region
    $region42: #{conv_mlp_minsnap_forward.1} parent=1 // pred_check
      _
    $region43: #{conv_mlp_minsnap_forward.1} parent=1 // pred_check_branch
      %49 = sbr.rel (0) target = $region45
    $region44: #{conv_mlp_minsnap_forward.1} parent=1 // pred_region
      _
    $region45: #{conv_mlp_minsnap_forward.1} parent=1 // pred_fallthru
      _
    // Predicated region
    $region46: #{conv_mlp_minsnap_forward.1} parent=1 // pred_check
      _
    $region47: #{conv_mlp_minsnap_forward.1} parent=1 // pred_check_branch
      %51 = sbr.rel (0) target = $region49
    $region48: #{conv_mlp_minsnap_forward.1} parent=1 // pred_region
      _
    $region49: #{conv_mlp_minsnap_forward.1} parent=1 // pred_fallthru
      _
    // Predicated region
    $region50: #{conv_mlp_minsnap_forward.1} parent=1 // pred_check
      _
    $region51: #{conv_mlp_minsnap_forward.1} parent=1 // pred_check_branch
      %53 = sbr.rel (0) target = $region53
    $region52: #{conv_mlp_minsnap_forward.1} parent=1 // pred_region
      %54 = dma.done [#allocation3], 12800
    $region53: #{conv_mlp_minsnap_forward.1} parent=1 // pred_fallthru
      _
    %v56 = vld [vmem:[%s11] ss:$0 sm:$0xff]
    %v57 = vld [vmem:[%s11 + $0x1] ss:$0 sm:$0xff]
    %s58 = scalar_lea.vmem %s11, 2
    %v59 = vld [vmem:[%s58] ss:$8 sm:$0x3]
    %v60 = vld [vmem:[%s11 + $0x3] ss:$0 sm:$0xff]
    %v61 = vld [vmem:[%s11 + $0x4] ss:$0 sm:$0xff]
    %v62 = vld [vmem:[%s11 + $0x5] ss:$0 sm:$0xff]
    %v63 = vld [vmem:[%s11 + $0x6] ss:$0 sm:$0xff]
    %v64 = vld [vmem:[%s11 + $0x7] ss:$0 sm:$0xff]
    %v65 = vld [vmem:[%s11 + $0x10] ss:$0 sm:$0xff]
    %v66 = vld [vmem:[%s11 + $0x11] ss:$0 sm:$0xff]
    %v67 = vld [vmem:[%s0] sm:$0x3]
    %v68 = vld [vmem:[%s2] sm:$0xff]
    %v69 = vld [vmem:[%s2 + $0x8] sm:$0xff]
    %v70 = vld [vmem:[%s2 + $0x10] sm:$0x3]
    %vm71 = vcmask 146432
    %v73 = vsel %vm71, %v67, 0
    %vm75 = vcmask 1041408
    %v77 = vsel %vm75, %v70, 0
    %79 = vmatprep.subr.mxu0 0.0
    %80 = vmatpush1.msra.mxu0 %v68
    %81 = vmatprep.subr.mxu0 0.0
    %82 = vmatpush1.msra.mxu0 %v69
    %83 = vmatprep.subr.mxu0 0.0
    %84 = vmatpush1.msra.mxu0 %v77
    %85 = vmatprep.subr.mxu0 0.0
    %86 = vmatpush1.msra.mxu0 0.0
    %87 = vmatprep.subr.mxu0 0.0
    %88 = vmatpush1.msra.mxu0 0.0
    %89 = vmatprep.subr.mxu0 0.0
    %90 = vmatpush1.msra.mxu0 0.0
    %91 = vmatprep.subr.mxu0 0.0
    %92 = vmatpush1.msra.mxu0 0.0
    %93 = vmatprep.subr.mxu0 0.0
    %94 = vmatpush1.msra.mxu0 0.0
    %95 = vmatprep.subr.mxu0 0.0
    %96 = vmatpush1.msra.mxu0 0.0
    %97 = vmatprep.subr.mxu0 0.0
    %98 = vmatpush1.msra.mxu0 0.0
    %99 = vmatprep.subr.mxu0 0.0
    %100 = vmatpush1.msra.mxu0 0.0
    %101 = vmatprep.subr.mxu0 0.0
    %102 = vmatpush1.msra.mxu0 0.0
    %103 = vmatprep.subr.mxu0 0.0
    %104 = vmatpush1.msra.mxu0 0.0
    %105 = vmatprep.subr.mxu0 0.0
    %106 = vmatpush1.msra.mxu0 0.0
    %107 = vmatprep.subr.mxu0 0.0
    %108 = vmatpush1.msra.mxu0 0.0
    %109 = vmatprep.subr.mxu0 0.0
    %110 = vmatpush1.msra.mxu0 0.0
    %111 = vmatprep.subr.mxu0 0.0
    %112 = vmatpush1.msra.mxu0 0.0
    %113 = vmatprep.subr.mxu0 0.0
    %114 = vmatpush1.msra.mxu0 0.0
    %115 = vmatprep.subr.mxu0 0.0
    %116 = vmatpush1.msra.mxu0 0.0
    %117 = vmatprep.subr.mxu0 0.0
    %118 = vmatpush1.msra.mxu0 0.0
    %119 = vmatprep.subr.mxu0 0.0
    %120 = vmatpush1.msra.mxu0 0.0
    %121 = vmatprep.subr.mxu0 0.0
    %122 = vmatpush1.msra.mxu0 0.0
    %123 = vmatprep.subr.mxu0 0.0
    %124 = vmatpush1.msra.mxu0 0.0
    %125 = vmatprep.subr.mxu0 0.0
    %126 = vmatpush1.msra.mxu0 0.0
    %127 = vmatprep.subr.mxu0 0.0
    %128 = vmatpush1.msra.mxu0 0.0
    %129 = vmatprep.subr.mxu0 0.0
    %130 = vmatpush1.msra.mxu0 0.0
    %131 = vmatprep.subr.mxu0 0.0
    %132 = vmatpush1.msra.mxu0 0.0
    %133 = vmatprep.subr.mxu0 0.0
    %134 = vmatpush1.msra.mxu0 0.0
    %135 = vmatprep.subr.mxu0 0.0
    %136 = vmatpush1.msra.mxu0 0.0
    %137 = vmatprep.subr.mxu0 0.0
    %138 = vmatpush1.msra.mxu0 0.0
    %139 = vmatprep.subr.mxu0 0.0
    %140 = vmatpush1.msra.mxu0 0.0
    %141 = vmatprep.subr.mxu0 0.0
    %142 = vmatpush1.msra.mxu0 0.0
    %143 = vmatprep.mubr.f32.mxu0 0.0
    %144 = vmatmul.mubr.f32.gmra.mrb[0].mxu0 %v73
    %v145 = vpop.f32.mrb[0].mxu0
    %v146 = vadd.f32 %v56, %v145
    %v147 = vpop.f32.mrb[0].mxu0
    %148 = vdwg.mxu0
    %v149 = vmax.f32 %v146, 0.0
    %151 = vrot.lane.b32.xlu0 %v149, 120
    %v152 = vpop.permute.xlu0 %151
    %v154 = vmax.f32 %v149, %v152
    %v155 = vld [vmem:[%s3] sm:$0xff]
    %vm156 = vcmask 64512
    %v158 = vsel %vm156, %v154, 0
    %160 = vmatprep.subr.mxu0 0.0
    %161 = vmatpush1.msra.mxu0 %v155
    %162 = vmatprep.subr.mxu0 0.0
    %163 = vmatpush1.msra.mxu0 0.0
    %164 = vmatprep.subr.mxu0 0.0
    %165 = vmatpush1.msra.mxu0 0.0
    %166 = vmatprep.subr.mxu0 0.0
    %167 = vmatpush1.msra.mxu0 0.0
    %168 = vmatprep.subr.mxu0 0.0
    %169 = vmatpush1.msra.mxu0 0.0
    %170 = vmatprep.subr.mxu0 0.0
    %171 = vmatpush1.msra.mxu0 0.0
    %172 = vmatprep.subr.mxu0 0.0
    %173 = vmatpush1.msra.mxu0 0.0
    %174 = vmatprep.subr.mxu0 0.0
    %175 = vmatpush1.msra.mxu0 0.0
    %176 = vmatprep.subr.mxu0 0.0
    %177 = vmatpush1.msra.mxu0 0.0
    %178 = vmatprep.subr.mxu0 0.0
    %179 = vmatpush1.msra.mxu0 0.0
    %180 = vmatprep.subr.mxu0 0.0
    %181 = vmatpush1.msra.mxu0 0.0
    %182 = vmatprep.subr.mxu0 0.0
    %183 = vmatpush1.msra.mxu0 0.0
    %184 = vmatprep.subr.mxu0 0.0
    %185 = vmatpush1.msra.mxu0 0.0
    %186 = vmatprep.subr.mxu0 0.0
    %187 = vmatpush1.msra.mxu0 0.0
    %188 = vmatprep.subr.mxu0 0.0
    %189 = vmatpush1.msra.mxu0 0.0
    %190 = vmatprep.subr.mxu0 0.0
    %191 = vmatpush1.msra.mxu0 0.0
    %192 = vmatprep.subr.mxu0 0.0
    %193 = vmatpush1.msra.mxu0 0.0
    %194 = vmatprep.subr.mxu0 0.0
    %195 = vmatpush1.msra.mxu0 0.0
    %196 = vmatprep.subr.mxu0 0.0
    %197 = vmatpush1.msra.mxu0 0.0
    %198 = vmatprep.subr.mxu0 0.0
    %199 = vmatpush1.msra.mxu0 0.0
    %200 = vmatprep.subr.mxu0 0.0
    %201 = vmatpush1.msra.mxu0 0.0
    %202 = vmatprep.subr.mxu0 0.0
    %203 = vmatpush1.msra.mxu0 0.0
    %204 = vmatprep.subr.mxu0 0.0
    %205 = vmatpush1.msra.mxu0 0.0
    %206 = vmatprep.subr.mxu0 0.0
    %207 = vmatpush1.msra.mxu0 0.0
    %208 = vmatprep.subr.mxu0 0.0
    %209 = vmatpush1.msra.mxu0 0.0
    %210 = vmatprep.subr.mxu0 0.0
    %211 = vmatpush1.msra.mxu0 0.0
    %212 = vmatprep.subr.mxu0 0.0
    %213 = vmatpush1.msra.mxu0 0.0
    %214 = vmatprep.subr.mxu0 0.0
    %215 = vmatpush1.msra.mxu0 0.0
    %216 = vmatprep.subr.mxu0 0.0
    %217 = vmatpush1.msra.mxu0 0.0
    %218 = vmatprep.subr.mxu0 0.0
    %219 = vmatpush1.msra.mxu0 0.0
    %220 = vmatprep.subr.mxu0 0.0
    %221 = vmatpush1.msra.mxu0 0.0
    %222 = vmatprep.subr.mxu0 0.0
    %223 = vmatpush1.msra.mxu0 0.0
    %224 = vmatprep.mubr.f32.mxu0 0.0
    %225 = vmatmul.mubr.f32.gmra.mrb[0].mxu0 %v158
    %v226 = vpop.f32.mrb[0].mxu0
    %v227 = vadd.f32 %v57, %v226
    %v228 = vpop.f32.mrb[0].mxu0
    %229 = vdwg.mxu0
    %v230 = vld [vmem:[%s1] sm:$0x7f]
    %v231 = vld [vmem:[#allocation2] sm:$0xff]
    %v232 = vld [vmem:[#allocation2 + $0x8] sm:$0xff]
    %v233 = vld [vmem:[#allocation2 + $0x10] sm:$0xff]
    %v234 = vld [vmem:[#allocation2 + $0x18] sm:$0xff]
    %v235 = vld [vmem:[#allocation2 + $0x20] sm:$0xff]
    %v236 = vld [vmem:[#allocation2 + $0x28] sm:$0xff]
    %v237 = vld [vmem:[#allocation2 + $0x30] sm:$0xff]
    %v238 = vld [vmem:[#allocation2 + $0x38] sm:$0xff]
    %v239 = vld [vmem:[#allocation2 + $0x40] sm:$0xff]
    %v240 = vld [vmem:[#allocation2 + $0x48] sm:$0xff]
    %v241 = vld [vmem:[#allocation2 + $0x50] sm:$0xff]
    %v242 = vld [vmem:[#allocation2 + $0x58] sm:$0xff]
    %v243 = vld [vmem:[#allocation2 + $0x60] sm:$0xff]
    %v244 = vld [vmem:[#allocation2 + $0x68] sm:$0xff]
    %v245 = vld [vmem:[#allocation2 + $0x70] sm:$0xff]
    %v246 = vld [vmem:[#allocation2 + $0x78] sm:$0xff]
    %v247 = vld [vmem:[#allocation2 + $0x80] sm:$0xff]
    %v248 = vld [vmem:[#allocation2 + $0x88] sm:$0xff]
    %v249 = vld [vmem:[#allocation2 + $0x90] sm:$0xff]
    %v250 = vld [vmem:[#allocation2 + $0x98] sm:$0xff]
    %v251 = vld [vmem:[#allocation2 + $0xa0] sm:$0xff]
    %v252 = vld [vmem:[#allocation2 + $0xa8] sm:$0xff]
    %v253 = vld [vmem:[#allocation2 + $0xb0] sm:$0xff]
    %v254 = vld [vmem:[#allocation2 + $0xb8] sm:$0xff]
    %v255 = vld [vmem:[#allocation2 + $0xc0] sm:$0xff]
    %v256 = vld [vmem:[#allocation2 + $0xc8] sm:$0xff]
    %v257 = vld [vmem:[#allocation2 + $0xd0] sm:$0xff]
    %v258 = vld [vmem:[#allocation2 + $0xd8] sm:$0xff]
    %v259 = vld [vmem:[#allocation2 + $0xe0] sm:$0xff]
    %v260 = vld [vmem:[#allocation2 + $0xe8] sm:$0xff]
    %v261 = vld [vmem:[#allocation2 + $0xf0] sm:$0xff]
    %v262 = vld [vmem:[#allocation2 + $0xf8] sm:$0xff]
    %v263 = vld [vmem:[#allocation2 + $0x100] sm:$0xff]
    %v264 = vld [vmem:[#allocation2 + $0x108] sm:$0xff]
    %v265 = vld [vmem:[#allocation2 + $0x110] sm:$0xff]
    %v266 = vld [vmem:[#allocation2 + $0x118] sm:$0xff]
    %v267 = vld [vmem:[#allocation2 + $0x120] sm:$0xff]
    %v268 = vld [vmem:[#allocation2 + $0x128] sm:$0xff]
    %v269 = vld [vmem:[#allocation2 + $0x130] sm:$0xff]
    %v270 = vld [vmem:[#allocation2 + $0x138] sm:$0xff]
    %v271 = vld [vmem:[#allocation2 + $0x140] sm:$0xff]
    %v272 = vld [vmem:[#allocation2 + $0x148] sm:$0xff]
    %v273 = vld [vmem:[#allocation2 + $0x150] sm:$0xff]
    %v274 = vld [vmem:[#allocation2 + $0x158] sm:$0xff]
    %v275 = vld [vmem:[#allocation2 + $0x160] sm:$0xff]
    %v276 = vld [vmem:[#allocation2 + $0x168] sm:$0xff]
    %v277 = vld [vmem:[#allocation2 + $0x170] sm:$0xff]
    %v278 = vld [vmem:[#allocation2 + $0x178] sm:$0xff]
    %v279 = vld [vmem:[#allocation2 + $0x180] sm:$0xff]
    %v280 = vld [vmem:[#allocation2 + $0x188] sm:$0xff]
    %v281 = vld [vmem:[#allocation2 + $0x190] sm:$0xff]
    %v282 = vld [vmem:[#allocation2 + $0x198] sm:$0xff]
    %v283 = vld [vmem:[#allocation2 + $0x1a0] sm:$0xff]
    %v284 = vld [vmem:[#allocation2 + $0x1a8] sm:$0xff]
    %v285 = vld [vmem:[#allocation2 + $0x1b0] sm:$0xff]
    %v286 = vld [vmem:[#allocation2 + $0x1b8] sm:$0xff]
    %v287 = vld [vmem:[#allocation2 + $0x1c0] sm:$0xff]
    %v288 = vld [vmem:[#allocation2 + $0x1c8] sm:$0xff]
    %v289 = vld [vmem:[#allocation2 + $0x1d0] sm:$0xff]
    %v290 = vld [vmem:[#allocation2 + $0x1d8] sm:$0xff]
    %v291 = vld [vmem:[#allocation2 + $0x1e0] sm:$0xff]
    %v292 = vld [vmem:[#allocation2 + $0x1e8] sm:$0xff]
    %v293 = vld [vmem:[#allocation2 + $0x1f0] sm:$0xff]
    %v294 = vld [vmem:[#allocation2 + $0x1f8] sm:$0xff]
    %v295 = vld [vmem:[#allocation2 + $0x200] sm:$0xff]
    %v296 = vld [vmem:[#allocation2 + $0x208] sm:$0xff]
    %v297 = vld [vmem:[#allocation2 + $0x210] sm:$0xff]
    %v298 = vld [vmem:[#allocation2 + $0x218] sm:$0xff]
    %v299 = vld [vmem:[#allocation2 + $0x220] sm:$0xff]
    %v300 = vld [vmem:[#allocation2 + $0x228] sm:$0xff]
    %v301 = vld [vmem:[#allocation2 + $0x230] sm:$0xff]
    %v302 = vld [vmem:[#allocation2 + $0x238] sm:$0xff]
    %v303 = vld [vmem:[#allocation2 + $0x240] sm:$0xff]
    %v304 = vld [vmem:[#allocation2 + $0x248] sm:$0xff]
    %v305 = vld [vmem:[#allocation2 + $0x250] sm:$0xff]
    %v306 = vld [vmem:[#allocation2 + $0x258] sm:$0xff]
    %v307 = vld [vmem:[#allocation2 + $0x260] sm:$0xff]
    %v308 = vld [vmem:[#allocation2 + $0x268] sm:$0xff]
    %v309 = vld [vmem:[#allocation2 + $0x270] sm:$0xff]
    %v310 = vld [vmem:[#allocation2 + $0x278] sm:$0xff]
    %v311 = vld [vmem:[#allocation2 + $0x280] sm:$0xff]
    %v312 = vld [vmem:[#allocation2 + $0x288] sm:$0xff]
    %v313 = vld [vmem:[#allocation2 + $0x290] sm:$0xff]
    %v314 = vld [vmem:[#allocation2 + $0x298] sm:$0xff]
    %v315 = vld [vmem:[#allocation2 + $0x2a0] sm:$0xff]
    %v316 = vld [vmem:[#allocation2 + $0x2a8] sm:$0xff]
    %v317 = vld [vmem:[#allocation2 + $0x2b0] sm:$0xff]
    %v318 = vld [vmem:[#allocation2 + $0x2b8] sm:$0xff]
    %v319 = vld [vmem:[#allocation2 + $0x2c0] sm:$0xff]
    %v320 = vld [vmem:[#allocation2 + $0x2c8] sm:$0xff]
    %v321 = vld [vmem:[#allocation2 + $0x2d0] sm:$0xff]
    %v322 = vld [vmem:[#allocation2 + $0x2d8] sm:$0xff]
    %v323 = vld [vmem:[#allocation2 + $0x2e0] sm:$0xff]
    %v324 = vld [vmem:[#allocation2 + $0x2e8] sm:$0xff]
    %v325 = vld [vmem:[#allocation2 + $0x2f0] sm:$0xff]
    %v326 = vld [vmem:[#allocation2 + $0x2f8] sm:$0xff]
    %v327 = vld [vmem:[#allocation2 + $0x300] sm:$0xff]
    %v328 = vld [vmem:[#allocation2 + $0x308] sm:$0xff]
    %v329 = vld [vmem:[#allocation2 + $0x310] sm:$0xff]
    %v330 = vld [vmem:[#allocation2 + $0x318] sm:$0xff]
    %v332 = vlaneseq
    %v333 = vshrl.u32 %v332, 7
    %v334 = vsub.s32 0, %v333
    %v335 = vrot.slane %v59, %v334
    %v336 = vlaneseq
    %v337 = vshrl.u32 %v336, 7
    %v338 = vsub.s32 1, %v337
    %v339 = vrot.slane %v59, %v338
    %v343 = vcombine.high %v230, %v230
    %v345 = vunpack.c.l.s4 1966171168
    %v346 = vunpack.c.0.s8 %v345
    %v347 = vlaneseq
    %v348 = vshrl.u32 %v347, 7
    %v349 = vsub.s32 %v346, %v348
    %v350 = vrot.slane %v230, %v349
    %v352 = vunpack.c.l.s4 1966171168
    %v353 = vunpack.c.0.s8 %v352
    %v354 = vlaneseq
    %v355 = vshrl.u32 %v354, 7
    %v356 = vsub.s32 %v353, %v355
    %v357 = vrot.slane %v343, %v356
    %v358 = vcombine.high %v350, %v350
    %v359 = vcombine.high %v357, %v357
    %v361 = vunpack.c.l.s4 1966171168
    %v362 = vunpack.c.0.s8 %v361
    %v363 = vlaneseq
    %v364 = vshrl.u32 %v363, 7
    %v365 = vsub.s32 %v362, %v364
    %v366 = vrot.slane %v350, %v365
    %v368 = vunpack.c.l.s4 1966171168
    %v369 = vunpack.c.0.s8 %v368
    %v370 = vlaneseq
    %v371 = vshrl.u32 %v370, 7
    %v372 = vsub.s32 %v369, %v371
    %v373 = vrot.slane %v357, %v372
    %v375 = vunpack.c.l.s4 1966171168
    %v376 = vunpack.c.0.s8 %v375
    %v377 = vlaneseq
    %v378 = vshrl.u32 %v377, 7
    %v379 = vsub.s32 %v376, %v378
    %v380 = vrot.slane %v358, %v379
    %v382 = vunpack.c.l.s4 1966171168
    %v383 = vunpack.c.0.s8 %v382
    %v384 = vlaneseq
    %v385 = vshrl.u32 %v384, 7
    %v386 = vsub.s32 %v383, %v385
    %v387 = vrot.slane %v359, %v386
    %v388 = vcombine.high %v366, %v366
    %v389 = vcombine.high %v373, %v373
    %v390 = vcombine.high %v380, %v380
    %v497 = vunpack.c.l.b16 %v231
    %v498 = vunpack.c.h.b16 %v231
    %v499 = vunpack.c.l.b16 %v232
    %v500 = vunpack.c.h.b16 %v232
    %v501 = vunpack.c.l.b16 %v233
    %v502 = vunpack.c.h.b16 %v233
    %v503 = vunpack.c.l.b16 %v234
    %v504 = vunpack.c.h.b16 %v234
    %v505 = vunpack.c.l.b16 %v235
    %v506 = vunpack.c.h.b16 %v235
    %v507 = vunpack.c.l.b16 %v236
    %v508 = vunpack.c.h.b16 %v236
    %v509 = vunpack.c.l.b16 %v237
    %v510 = vunpack.c.h.b16 %v237
    %v511 = vunpack.c.l.b16 %v238
    %v512 = vunpack.c.h.b16 %v238
    %v513 = vunpack.c.l.b16 %v239
    %v514 = vunpack.c.h.b16 %v239
    %v515 = vunpack.c.l.b16 %v240
    %v516 = vunpack.c.h.b16 %v240
    %v517 = vunpack.c.l.b16 %v241
    %v518 = vunpack.c.h.b16 %v241
    %v519 = vunpack.c.l.b16 %v242
    %v520 = vunpack.c.h.b16 %v242
    %v521 = vunpack.c.l.b16 %v243
    %v522 = vunpack.c.h.b16 %v243
    %v523 = vunpack.c.l.b16 %v244
    %v524 = vunpack.c.h.b16 %v244
    %v525 = vunpack.c.l.b16 %v245
    %v526 = vunpack.c.h.b16 %v245
    %v527 = vunpack.c.l.b16 %v246
    %v528 = vunpack.c.h.b16 %v246
    %v529 = vunpack.c.l.b16 %v247
    %v530 = vunpack.c.h.b16 %v247
    %v531 = vunpack.c.l.b16 %v248
    %v532 = vunpack.c.h.b16 %v248
    %v533 = vunpack.c.l.b16 %v249
    %v534 = vunpack.c.h.b16 %v249
    %v535 = vunpack.c.l.b16 %v250
    %v536 = vunpack.c.h.b16 %v250
    %v537 = vunpack.c.l.b16 %v251
    %v538 = vunpack.c.h.b16 %v251
    %v539 = vunpack.c.l.b16 %v252
    %v540 = vunpack.c.h.b16 %v252
    %v541 = vunpack.c.l.b16 %v253
    %v542 = vunpack.c.h.b16 %v253
    %v543 = vunpack.c.l.b16 %v254
    %v544 = vunpack.c.h.b16 %v254
    %v545 = vunpack.c.l.b16 %v255
    %v546 = vunpack.c.h.b16 %v255
    %v547 = vunpack.c.l.b16 %v256
    %v548 = vunpack.c.h.b16 %v256
    %v549 = vunpack.c.l.b16 %v257
    %v550 = vunpack.c.h.b16 %v257
    %v551 = vunpack.c.l.b16 %v258
    %v552 = vunpack.c.h.b16 %v258
    %v553 = vunpack.c.l.b16 %v259
    %v554 = vunpack.c.h.b16 %v259
    %v555 = vunpack.c.l.b16 %v260
    %v556 = vunpack.c.h.b16 %v260
    %v557 = vunpack.c.l.b16 %v261
    %v558 = vunpack.c.h.b16 %v261
    %v559 = vunpack.c.l.b16 %v262
    %v560 = vunpack.c.h.b16 %v262
    %v561 = vunpack.c.l.b16 %v263
    %v562 = vunpack.c.h.b16 %v263
    %v563 = vunpack.c.l.b16 %v264
    %v564 = vunpack.c.h.b16 %v264
    %v565 = vunpack.c.l.b16 %v265
    %v566 = vunpack.c.h.b16 %v265
    %v567 = vunpack.c.l.b16 %v266
    %v568 = vunpack.c.h.b16 %v266
    %v569 = vunpack.c.l.b16 %v267
    %v570 = vunpack.c.h.b16 %v267
    %v571 = vunpack.c.l.b16 %v268
    %v572 = vunpack.c.h.b16 %v268
    %v573 = vunpack.c.l.b16 %v269
    %v574 = vunpack.c.h.b16 %v269
    %v575 = vunpack.c.l.b16 %v270
    %v576 = vunpack.c.h.b16 %v270
    %v577 = vunpack.c.l.b16 %v271
    %v578 = vunpack.c.h.b16 %v271
    %v579 = vunpack.c.l.b16 %v272
    %v580 = vunpack.c.h.b16 %v272
    %v581 = vunpack.c.l.b16 %v273
    %v582 = vunpack.c.h.b16 %v273
    %v583 = vunpack.c.l.b16 %v274
    %v584 = vunpack.c.h.b16 %v274
    %v585 = vunpack.c.l.b16 %v275
    %v586 = vunpack.c.h.b16 %v275
    %v587 = vunpack.c.l.b16 %v276
    %v588 = vunpack.c.h.b16 %v276
    %v589 = vunpack.c.l.b16 %v277
    %v590 = vunpack.c.h.b16 %v277
    %v591 = vunpack.c.l.b16 %v278
    %v592 = vunpack.c.h.b16 %v278
    %v593 = vunpack.c.l.b16 %v279
    %v594 = vunpack.c.h.b16 %v279
    %v595 = vunpack.c.l.b16 %v280
    %v596 = vunpack.c.h.b16 %v280
    %v597 = vunpack.c.l.b16 %v281
    %v598 = vunpack.c.h.b16 %v281
    %v599 = vunpack.c.l.b16 %v282
    %v600 = vunpack.c.h.b16 %v282
    %v601 = vunpack.c.l.b16 %v283
    %v602 = vunpack.c.h.b16 %v283
    %v603 = vunpack.c.l.b16 %v284
    %v604 = vunpack.c.h.b16 %v284
    %v605 = vunpack.c.l.b16 %v285
    %v606 = vunpack.c.h.b16 %v285
    %v607 = vunpack.c.l.b16 %v286
    %v608 = vunpack.c.h.b16 %v286
    %v609 = vunpack.c.l.b16 %v287
    %v610 = vunpack.c.h.b16 %v287
    %v611 = vunpack.c.l.b16 %v288
    %v612 = vunpack.c.h.b16 %v288
    %v613 = vunpack.c.l.b16 %v289
    %v614 = vunpack.c.h.b16 %v289
    %v615 = vunpack.c.l.b16 %v290
    %v616 = vunpack.c.h.b16 %v290
    %v617 = vunpack.c.l.b16 %v291
    %v618 = vunpack.c.h.b16 %v291
    %v619 = vunpack.c.l.b16 %v292
    %v620 = vunpack.c.h.b16 %v292
    %v621 = vunpack.c.l.b16 %v293
    %v622 = vunpack.c.h.b16 %v293
    %v623 = vunpack.c.l.b16 %v294
    %v624 = vunpack.c.h.b16 %v294
    %v625 = vunpack.c.l.b16 %v295
    %v626 = vunpack.c.h.b16 %v295
    %v627 = vunpack.c.l.b16 %v296
    %v628 = vunpack.c.h.b16 %v296
    %v629 = vunpack.c.l.b16 %v297
    %v630 = vunpack.c.h.b16 %v297
    %v631 = vunpack.c.l.b16 %v298
    %v632 = vunpack.c.h.b16 %v298
    %v633 = vunpack.c.l.b16 %v299
    %v634 = vunpack.c.h.b16 %v299
    %v635 = vunpack.c.l.b16 %v300
    %v636 = vunpack.c.h.b16 %v300
    %v637 = vunpack.c.l.b16 %v301
    %v638 = vunpack.c.h.b16 %v301
    %v639 = vunpack.c.l.b16 %v302
    %v640 = vunpack.c.h.b16 %v302
    %v641 = vunpack.c.l.b16 %v303
    %v642 = vunpack.c.h.b16 %v303
    %v643 = vunpack.c.l.b16 %v304
    %v644 = vunpack.c.h.b16 %v304
    %v645 = vunpack.c.l.b16 %v305
    %v646 = vunpack.c.h.b16 %v305
    %v647 = vunpack.c.l.b16 %v306
    %v648 = vunpack.c.h.b16 %v306
    %v649 = vunpack.c.l.b16 %v307
    %v650 = vunpack.c.h.b16 %v307
    %v651 = vunpack.c.l.b16 %v308
    %v652 = vunpack.c.h.b16 %v308
    %v653 = vunpack.c.l.b16 %v309
    %v654 = vunpack.c.h.b16 %v309
    %v655 = vunpack.c.l.b16 %v310
    %v656 = vunpack.c.h.b16 %v310
    %v657 = vunpack.c.l.b16 %v311
    %v658 = vunpack.c.h.b16 %v311
    %v659 = vunpack.c.l.b16 %v312
    %v660 = vunpack.c.h.b16 %v312
    %v661 = vunpack.c.l.b16 %v313
    %v662 = vunpack.c.h.b16 %v313
    %v663 = vunpack.c.l.b16 %v314
    %v664 = vunpack.c.h.b16 %v314
    %v665 = vunpack.c.l.b16 %v315
    %v666 = vunpack.c.h.b16 %v315
    %v667 = vunpack.c.l.b16 %v316
    %v668 = vunpack.c.h.b16 %v316
    %v669 = vunpack.c.l.b16 %v317
    %v670 = vunpack.c.h.b16 %v317
    %v671 = vunpack.c.l.b16 %v318
    %v672 = vunpack.c.h.b16 %v318
    %v673 = vunpack.c.l.b16 %v319
    %v674 = vunpack.c.h.b16 %v319
    %v675 = vunpack.c.l.b16 %v320
    %v676 = vunpack.c.h.b16 %v320
    %v677 = vunpack.c.l.b16 %v321
    %v678 = vunpack.c.h.b16 %v321
    %v679 = vunpack.c.l.b16 %v322
    %v680 = vunpack.c.h.b16 %v322
    %v681 = vunpack.c.l.b16 %v323
    %v682 = vunpack.c.h.b16 %v323
    %v683 = vunpack.c.l.b16 %v324
    %v684 = vunpack.c.h.b16 %v324
    %v685 = vunpack.c.l.b16 %v325
    %v686 = vunpack.c.h.b16 %v325
    %v687 = vunpack.c.l.b16 %v326
    %v688 = vunpack.c.h.b16 %v326
    %v689 = vunpack.c.l.b16 %v327
    %v690 = vunpack.c.h.b16 %v327
    %v691 = vunpack.c.l.b16 %v328
    %v692 = vunpack.c.h.b16 %v328
    %v693 = vunpack.c.l.b16 %v329
    %v694 = vunpack.c.h.b16 %v329
    %v695 = vunpack.c.l.b16 %v330
    %v696 = vunpack.c.h.b16 %v330
    %v697 = vpack.c.b16 %v499, %v497
    %v698 = vpack.c.b16 %v500, %v498
    %v699 = vpack.c.b16 %v503, %v501
    %v700 = vpack.c.b16 %v504, %v502
    %v701 = vpack.c.b16 %v507, %v505
    %v702 = vpack.c.b16 %v508, %v506
    %v703 = vpack.c.b16 %v511, %v509
    %v704 = vpack.c.b16 %v512, %v510
    %v705 = vpack.c.b16 %v515, %v513
    %v706 = vpack.c.b16 %v516, %v514
    %v707 = vpack.c.b16 %v519, %v517
    %v708 = vpack.c.b16 %v520, %v518
    %v709 = vpack.c.b16 %v523, %v521
    %v710 = vpack.c.b16 %v524, %v522
    %v711 = vpack.c.b16 %v527, %v525
    %v712 = vpack.c.b16 %v528, %v526
    %v713 = vpack.c.b16 %v531, %v529
    %v714 = vpack.c.b16 %v532, %v530
    %v715 = vpack.c.b16 %v535, %v533
    %v716 = vpack.c.b16 %v536, %v534
    %v717 = vpack.c.b16 %v539, %v537
    %v718 = vpack.c.b16 %v540, %v538
    %v719 = vpack.c.b16 %v543, %v541
    %v720 = vpack.c.b16 %v544, %v542
    %v721 = vpack.c.b16 %v547, %v545
    %v722 = vpack.c.b16 %v548, %v546
    %v723 = vpack.c.b16 %v551, %v549
    %v724 = vpack.c.b16 %v552, %v550
    %v725 = vpack.c.b16 %v555, %v553
    %v726 = vpack.c.b16 %v556, %v554
    %v727 = vpack.c.b16 %v559, %v557
    %v728 = vpack.c.b16 %v560, %v558
    %v729 = vpack.c.b16 %v563, %v561
    %v730 = vpack.c.b16 %v564, %v562
    %v731 = vpack.c.b16 %v567, %v565
    %v732 = vpack.c.b16 %v568, %v566
    %v733 = vpack.c.b16 %v571, %v569
    %v734 = vpack.c.b16 %v572, %v570
    %v735 = vpack.c.b16 %v575, %v573
    %v736 = vpack.c.b16 %v576, %v574
    %v737 = vpack.c.b16 %v579, %v577
    %v738 = vpack.c.b16 %v580, %v578
    %v739 = vpack.c.b16 %v583, %v581
    %v740 = vpack.c.b16 %v584, %v582
    %v741 = vpack.c.b16 %v587, %v585
    %v742 = vpack.c.b16 %v588, %v586
    %v743 = vpack.c.b16 %v591, %v589
    %v744 = vpack.c.b16 %v592, %v590
    %v745 = vpack.c.b16 %v595, %v593
    %v746 = vpack.c.b16 %v596, %v594
    %v747 = vpack.c.b16 %v599, %v597
    %v748 = vpack.c.b16 %v600, %v598
    %v749 = vpack.c.b16 %v603, %v601
    %v750 = vpack.c.b16 %v604, %v602
    %v751 = vpack.c.b16 %v607, %v605
    %v752 = vpack.c.b16 %v608, %v606
    %v753 = vpack.c.b16 %v611, %v609
    %v754 = vpack.c.b16 %v612, %v610
    %v755 = vpack.c.b16 %v615, %v613
    %v756 = vpack.c.b16 %v616, %v614
    %v757 = vpack.c.b16 %v619, %v617
    %v758 = vpack.c.b16 %v620, %v618
    %v759 = vpack.c.b16 %v623, %v621
    %v760 = vpack.c.b16 %v624, %v622
    %v761 = vpack.c.b16 %v627, %v625
    %v762 = vpack.c.b16 %v628, %v626
    %v763 = vpack.c.b16 %v631, %v629
    %v764 = vpack.c.b16 %v632, %v630
    %v765 = vpack.c.b16 %v635, %v633
    %v766 = vpack.c.b16 %v636, %v634
    %v767 = vpack.c.b16 %v639, %v637
    %v768 = vpack.c.b16 %v640, %v638
    %v769 = vpack.c.b16 %v643, %v641
    %v770 = vpack.c.b16 %v644, %v642
    %v771 = vpack.c.b16 %v647, %v645
    %v772 = vpack.c.b16 %v648, %v646
    %v773 = vpack.c.b16 %v651, %v649
    %v774 = vpack.c.b16 %v652, %v650
    %v775 = vpack.c.b16 %v655, %v653
    %v776 = vpack.c.b16 %v656, %v654
    %v777 = vpack.c.b16 %v659, %v657
    %v778 = vpack.c.b16 %v660, %v658
    %v779 = vpack.c.b16 %v663, %v661
    %v780 = vpack.c.b16 %v664, %v662
    %v781 = vpack.c.b16 %v667, %v665
    %v782 = vpack.c.b16 %v668, %v666
    %v783 = vpack.c.b16 %v671, %v669
    %v784 = vpack.c.b16 %v672, %v670
    %v785 = vpack.c.b16 %v675, %v673
    %v786 = vpack.c.b16 %v676, %v674
    %v787 = vpack.c.b16 %v679, %v677
    %v788 = vpack.c.b16 %v680, %v678
    %v789 = vpack.c.b16 %v683, %v681
    %v790 = vpack.c.b16 %v684, %v682
    %v791 = vpack.c.b16 %v687, %v685
    %v792 = vpack.c.b16 %v688, %v686
    %v793 = vpack.c.b16 %v691, %v689
    %v794 = vpack.c.b16 %v692, %v690
    %v795 = vpack.c.b16 %v695, %v693
    %v796 = vpack.c.b16 %v696, %v694
    %vm897 = vcmask 261120
    %v899 = vsel %vm897, %v389, 0
    %901 = vmatprep.subr.bf16.mxu0 %v698
    %902 = vmatpush1.bf16.msra.mxu0 %v697
    %903 = vmatprep.subr.bf16.mxu0 %v700
    %904 = vmatpush1.bf16.msra.mxu0 %v699
    %905 = vmatprep.subr.bf16.mxu0 %v702
    %906 = vmatpush1.bf16.msra.mxu0 %v701
    %907 = vmatprep.subr.bf16.mxu0 %v704
    %908 = vmatpush1.bf16.msra.mxu0 %v703
    %909 = vmatprep.subr.bf16.mxu0 %v706
    %910 = vmatpush1.bf16.msra.mxu0 %v705
    %911 = vmatprep.subr.bf16.mxu0 %v708
    %912 = vmatpush1.bf16.msra.mxu0 %v707
    %913 = vmatprep.subr.bf16.mxu0 %v710
    %914 = vmatpush1.bf16.msra.mxu0 %v709
    %915 = vmatprep.subr.bf16.mxu0 %v712
    %916 = vmatpush1.bf16.msra.mxu0 %v711
    %917 = vmatprep.subr.bf16.mxu0 %v714
    %918 = vmatpush1.bf16.msra.mxu0 %v713
    %919 = vmatprep.subr.bf16.mxu0 %v716
    %920 = vmatpush1.bf16.msra.mxu0 %v715
    %921 = vmatprep.subr.bf16.mxu0 %v718
    %922 = vmatpush1.bf16.msra.mxu0 %v717
    %923 = vmatprep.subr.bf16.mxu0 %v720
    %924 = vmatpush1.bf16.msra.mxu0 %v719
    %925 = vmatprep.subr.bf16.mxu0 %v722
    %926 = vmatpush1.bf16.msra.mxu0 %v721
    %927 = vmatprep.subr.bf16.mxu0 %v724
    %928 = vmatpush1.bf16.msra.mxu0 %v723
    %929 = vmatprep.subr.bf16.mxu0 %v726
    %930 = vmatpush1.bf16.msra.mxu0 %v725
    %931 = vmatprep.subr.bf16.mxu0 %v728
    %932 = vmatpush1.bf16.msra.mxu0 %v727
    %933 = vmatprep.mubr.bf16.mxu0 %v380
    %934 = vmatmul.mubr.bf16.gmra.mrb[0].mxu0 %v366
    %v935 = vpop.f32.mrb[0].mxu0
    %v936 = vadd.f32 %v335, %v935
    %v937 = vpop.f32.mrb[0].mxu0
    %v938 = vadd.f32 %v339, %v937
    %v939 = vpop.f32.mrb[0].mxu0
    %v940 = vpop.f32.mrb[0].mxu0
    %941 = vdwg.mxu0
    %942 = vmatprep.subr.bf16.mxu0 %v730
    %943 = vmatpush1.bf16.msra.mxu0 %v729
    %944 = vmatprep.subr.bf16.mxu0 %v732
    %945 = vmatpush1.bf16.msra.mxu0 %v731
    %946 = vmatprep.subr.bf16.mxu0 %v734
    %947 = vmatpush1.bf16.msra.mxu0 %v733
    %948 = vmatprep.subr.bf16.mxu0 %v736
    %949 = vmatpush1.bf16.msra.mxu0 %v735
    %950 = vmatprep.subr.bf16.mxu0 %v738
    %951 = vmatpush1.bf16.msra.mxu0 %v737
    %952 = vmatprep.subr.bf16.mxu0 %v740
    %953 = vmatpush1.bf16.msra.mxu0 %v739
    %954 = vmatprep.subr.bf16.mxu0 %v742
    %955 = vmatpush1.bf16.msra.mxu0 %v741
    %956 = vmatprep.subr.bf16.mxu0 %v744
    %957 = vmatpush1.bf16.msra.mxu0 %v743
    %958 = vmatprep.subr.bf16.mxu0 %v746
    %959 = vmatpush1.bf16.msra.mxu0 %v745
    %960 = vmatprep.subr.bf16.mxu0 %v748
    %961 = vmatpush1.bf16.msra.mxu0 %v747
    %962 = vmatprep.subr.bf16.mxu0 %v750
    %963 = vmatpush1.bf16.msra.mxu0 %v749
    %964 = vmatprep.subr.bf16.mxu0 %v752
    %965 = vmatpush1.bf16.msra.mxu0 %v751
    %966 = vmatprep.subr.bf16.mxu0 %v754
    %967 = vmatpush1.bf16.msra.mxu0 %v753
    %968 = vmatprep.subr.bf16.mxu0 %v756
    %969 = vmatpush1.bf16.msra.mxu0 %v755
    %970 = vmatprep.subr.bf16.mxu0 %v758
    %971 = vmatpush1.bf16.msra.mxu0 %v757
    %972 = vmatprep.subr.bf16.mxu0 %v760
    %973 = vmatpush1.bf16.msra.mxu0 %v759
    %974 = vmatprep.mubr.bf16.mxu0 %v390
    %975 = vmatmul.mubr.bf16.gmra.mrb[0].mxu0 %v388
    %v976 = vpop.f32.mrb[0].mxu0
    %v977 = vadd.f32 %v936, %v976
    %v978 = vpop.f32.mrb[0].mxu0
    %v979 = vadd.f32 %v938, %v978
    %v980 = vpop.f32.mrb[0].mxu0
    %v981 = vpop.f32.mrb[0].mxu0
    %982 = vdwg.mxu0
    %983 = vmatprep.subr.bf16.mxu0 %v762
    %984 = vmatpush1.bf16.msra.mxu0 %v761
    %985 = vmatprep.subr.bf16.mxu0 %v764
    %986 = vmatpush1.bf16.msra.mxu0 %v763
    %987 = vmatprep.subr.bf16.mxu0 %v766
    %988 = vmatpush1.bf16.msra.mxu0 %v765
    %989 = vmatprep.subr.bf16.mxu0 %v768
    %990 = vmatpush1.bf16.msra.mxu0 %v767
    %991 = vmatprep.subr.bf16.mxu0 %v770
    %992 = vmatpush1.bf16.msra.mxu0 %v769
    %993 = vmatprep.subr.bf16.mxu0 %v772
    %994 = vmatpush1.bf16.msra.mxu0 %v771
    %995 = vmatprep.subr.bf16.mxu0 %v774
    %996 = vmatpush1.bf16.msra.mxu0 %v773
    %997 = vmatprep.subr.bf16.mxu0 %v776
    %998 = vmatpush1.bf16.msra.mxu0 %v775
    %999 = vmatprep.subr.bf16.mxu0 %v778
    %1000 = vmatpush1.bf16.msra.mxu0 %v777
    %1001 = vmatprep.subr.bf16.mxu0 %v780
    %1002 = vmatpush1.bf16.msra.mxu0 %v779
    %1003 = vmatprep.subr.bf16.mxu0 %v782
    %1004 = vmatpush1.bf16.msra.mxu0 %v781
    %1005 = vmatprep.subr.bf16.mxu0 %v784
    %1006 = vmatpush1.bf16.msra.mxu0 %v783
    %1007 = vmatprep.subr.bf16.mxu0 %v786
    %1008 = vmatpush1.bf16.msra.mxu0 %v785
    %1009 = vmatprep.subr.bf16.mxu0 %v788
    %1010 = vmatpush1.bf16.msra.mxu0 %v787
    %1011 = vmatprep.subr.bf16.mxu0 %v790
    %1012 = vmatpush1.bf16.msra.mxu0 %v789
    %1013 = vmatprep.subr.bf16.mxu0 %v792
    %1014 = vmatpush1.bf16.msra.mxu0 %v791
    %1015 = vmatprep.mubr.bf16.mxu0 %v387
    %1016 = vmatmul.mubr.bf16.gmra.mrb[0].mxu0 %v373
    %v1017 = vpop.f32.mrb[0].mxu0
    %v1018 = vadd.f32 %v977, %v1017
    %v1019 = vpop.f32.mrb[0].mxu0
    %v1020 = vadd.f32 %v979, %v1019
    %v1021 = vpop.f32.mrb[0].mxu0
    %v1022 = vpop.f32.mrb[0].mxu0
    %1023 = vdwg.mxu0
    %1024 = vmatprep.subr.bf16.mxu0 %v794
    %1025 = vmatpush1.bf16.msra.mxu0 %v793
    %1026 = vmatprep.subr.bf16.mxu0 %v796
    %1027 = vmatpush1.bf16.msra.mxu0 %v795
    %1028 = vmatprep.subr.bf16.mxu0 0
    %1029 = vmatpush1.bf16.msra.mxu0 0
    %1030 = vmatprep.subr.bf16.mxu0 0
    %1031 = vmatpush1.bf16.msra.mxu0 0
    %1032 = vmatprep.subr.bf16.mxu0 0
    %1033 = vmatpush1.bf16.msra.mxu0 0
    %1034 = vmatprep.subr.bf16.mxu0 0
    %1035 = vmatpush1.bf16.msra.mxu0 0
    %1036 = vmatprep.subr.bf16.mxu0 0
    %1037 = vmatpush1.bf16.msra.mxu0 0
    %1038 = vmatprep.subr.bf16.mxu0 0
    %1039 = vmatpush1.bf16.msra.mxu0 0
    %1040 = vmatprep.subr.bf16.mxu0 0
    %1041 = vmatpush1.bf16.msra.mxu0 0
    %1042 = vmatprep.subr.bf16.mxu0 0
    %1043 = vmatpush1.bf16.msra.mxu0 0
    %1044 = vmatprep.subr.bf16.mxu0 0
    %1045 = vmatpush1.bf16.msra.mxu0 0
    %1046 = vmatprep.subr.bf16.mxu0 0
    %1047 = vmatpush1.bf16.msra.mxu0 0
    %1048 = vmatprep.subr.bf16.mxu0 0
    %1049 = vmatpush1.bf16.msra.mxu0 0
    %1050 = vmatprep.subr.bf16.mxu0 0
    %1051 = vmatpush1.bf16.msra.mxu0 0
    %1052 = vmatprep.subr.bf16.mxu0 0
    %1053 = vmatpush1.bf16.msra.mxu0 0
    %1054 = vmatprep.subr.bf16.mxu0 0
    %1055 = vmatpush1.bf16.msra.mxu0 0
    %1056 = vmatprep.mubr.bf16.mxu0 0
    %1057 = vmatmul.mubr.bf16.gmra.mrb[0].mxu0 %v899
    %v1058 = vpop.f32.mrb[0].mxu0
    %v1059 = vadd.f32 %v1018, %v1058
    %v1060 = vpop.f32.mrb[0].mxu0
    %v1061 = vadd.f32 %v1020, %v1060
    %v1062 = vpop.f32.mrb[0].mxu0
    %v1063 = vpop.f32.mrb[0].mxu0
    %1064 = vdwg.mxu0
    %v1065 = vmax.f32 %v1059, 0.0
    %v1066 = vmax.f32 %v1061, 0.0
    %1068 = vrot.lane.b32.xlu0 %v1065, 112
    %v1069 = vpop.permute.xlu0 %1068
    %v1071 = vmax.f32 %v1065, %v1069
    %1072 = vrot.lane.b32.xlu0 %v1065, 96
    %v1073 = vpop.permute.xlu0 %1072
    %v1075 = vmax.f32 %v1071, %v1073
    %1076 = vrot.lane.b32.xlu0 %v1065, 80
    %v1077 = vpop.permute.xlu0 %1076
    %v1079 = vmax.f32 %v1075, %v1077
    %1080 = vrot.lane.b32.xlu0 %v1065, 64
    %v1081 = vpop.permute.xlu0 %1080
    %v1083 = vmax.f32 %v1079, %v1081
    %1084 = vrot.lane.b32.xlu0 %v1065, 48
    %v1085 = vpop.permute.xlu0 %1084
    %v1087 = vmax.f32 %v1083, %v1085
    %1088 = vrot.lane.b32.xlu0 %v1065, 32
    %v1089 = vpop.permute.xlu0 %1088
    %v1091 = vmax.f32 %v1087, %v1089
    %1092 = vrot.lane.b32.xlu0 %v1065, 16
    %v1093 = vpop.permute.xlu0 %1092
    %v1095 = vmax.f32 %v1091, %v1093
    %v1096 = vmax.f32 %v1095, %v1066
    %1098 = vrot.lane.b32.xlu0 %v1066, 112
    %v1099 = vpop.permute.xlu0 %1098
    %v1101 = vmax.f32 %v1096, %v1099
    %1102 = vrot.lane.b32.xlu0 %v1066, 96
    %v1103 = vpop.permute.xlu0 %1102
    %v1105 = vmax.f32 %v1101, %v1103
    %1106 = vrot.lane.b32.xlu0 %v1066, 80
    %v1107 = vpop.permute.xlu0 %1106
    %v1109 = vmax.f32 %v1105, %v1107
    %1110 = vrot.lane.b32.xlu0 %v1066, 64
    %v1111 = vpop.permute.xlu0 %1110
    %v1113 = vmax.f32 %v1109, %v1111
    %1114 = vrot.lane.b32.xlu0 %v1066, 48
    %v1115 = vpop.permute.xlu0 %1114
    %v1117 = vmax.f32 %v1113, %v1115
    %1118 = vrot.lane.b32.xlu0 %v1066, 32
    %v1119 = vpop.permute.xlu0 %1118
    %v1121 = vmax.f32 %v1117, %v1119
    %1122 = vrot.lane.b32.xlu0 %v1066, 16
    %v1123 = vpop.permute.xlu0 %1122
    %v1125 = vmax.f32 %v1121, %v1123
    %v1126 = vld [vmem:[%s5] sm:$0xff]
    %v1127 = vld [vmem:[%s5 + $0x8] sm:$0xff]
    %vm1128 = vcmask 130048
    %v1130 = vsel %vm1128, %v1125, 0
    %1132 = vmatprep.subr.mxu0 0.0
    %1133 = vmatpush1.msra.mxu0 %v1126
    %1134 = vmatprep.subr.mxu0 0.0
    %1135 = vmatpush1.msra.mxu0 %v1127
    %1136 = vmatprep.subr.mxu0 0.0
    %1137 = vmatpush1.msra.mxu0 0.0
    %1138 = vmatprep.subr.mxu0 0.0
    %1139 = vmatpush1.msra.mxu0 0.0
    %1140 = vmatprep.subr.mxu0 0.0
    %1141 = vmatpush1.msra.mxu0 0.0
    %1142 = vmatprep.subr.mxu0 0.0
    %1143 = vmatpush1.msra.mxu0 0.0
    %1144 = vmatprep.subr.mxu0 0.0
    %1145 = vmatpush1.msra.mxu0 0.0
    %1146 = vmatprep.subr.mxu0 0.0
    %1147 = vmatpush1.msra.mxu0 0.0
    %1148 = vmatprep.subr.mxu0 0.0
    %1149 = vmatpush1.msra.mxu0 0.0
    %1150 = vmatprep.subr.mxu0 0.0
    %1151 = vmatpush1.msra.mxu0 0.0
    %1152 = vmatprep.subr.mxu0 0.0
    %1153 = vmatpush1.msra.mxu0 0.0
    %1154 = vmatprep.subr.mxu0 0.0
    %1155 = vmatpush1.msra.mxu0 0.0
    %1156 = vmatprep.subr.mxu0 0.0
    %1157 = vmatpush1.msra.mxu0 0.0
    %1158 = vmatprep.subr.mxu0 0.0
    %1159 = vmatpush1.msra.mxu0 0.0
    %1160 = vmatprep.subr.mxu0 0.0
    %1161 = vmatpush1.msra.mxu0 0.0
    %1162 = vmatprep.subr.mxu0 0.0
    %1163 = vmatpush1.msra.mxu0 0.0
    %1164 = vmatprep.subr.mxu0 0.0
    %1165 = vmatpush1.msra.mxu0 0.0
    %1166 = vmatprep.subr.mxu0 0.0
    %1167 = vmatpush1.msra.mxu0 0.0
    %1168 = vmatprep.subr.mxu0 0.0
    %1169 = vmatpush1.msra.mxu0 0.0
    %1170 = vmatprep.subr.mxu0 0.0
    %1171 = vmatpush1.msra.mxu0 0.0
    %1172 = vmatprep.subr.mxu0 0.0
    %1173 = vmatpush1.msra.mxu0 0.0
    %1174 = vmatprep.subr.mxu0 0.0
    %1175 = vmatpush1.msra.mxu0 0.0
    %1176 = vmatprep.subr.mxu0 0.0
    %1177 = vmatpush1.msra.mxu0 0.0
    %1178 = vmatprep.subr.mxu0 0.0
    %1179 = vmatpush1.msra.mxu0 0.0
    %1180 = vmatprep.subr.mxu0 0.0
    %1181 = vmatpush1.msra.mxu0 0.0
    %1182 = vmatprep.subr.mxu0 0.0
    %1183 = vmatpush1.msra.mxu0 0.0
    %1184 = vmatprep.subr.mxu0 0.0
    %1185 = vmatpush1.msra.mxu0 0.0
    %1186 = vmatprep.subr.mxu0 0.0
    %1187 = vmatpush1.msra.mxu0 0.0
    %1188 = vmatprep.subr.mxu0 0.0
    %1189 = vmatpush1.msra.mxu0 0.0
    %1190 = vmatprep.subr.mxu0 0.0
    %1191 = vmatpush1.msra.mxu0 0.0
    %1192 = vmatprep.subr.mxu0 0.0
    %1193 = vmatpush1.msra.mxu0 0.0
    %1194 = vmatprep.subr.mxu0 0.0
    %1195 = vmatpush1.msra.mxu0 0.0
    %1196 = vmatprep.mubr.f32.mxu0 0.0
    %1197 = vmatmul.mubr.f32.gmra.mrb[0].mxu0 %v1130
    %v1198 = vpop.f32.mrb[0].mxu0
    %v1199 = vadd.f32 %v60, %v1198
    %v1200 = vpop.f32.mrb[0].mxu0
    %1201 = vdwg.mxu0
    %v1202 = vld [vmem:[%s6] sm:$0x3f]
    %v1203 = vld [vmem:[%s7] sm:$0xff]
    %v1204 = vld [vmem:[%s7 + $0x8] sm:$0xff]
    %v1205 = vld [vmem:[%s7 + $0x10] sm:$0xff]
    %v1206 = vld [vmem:[%s7 + $0x18] sm:$0xff]
    %v1208 = vsel %vm897, %v1199, 0
    %1210 = vmatprep.subr.mxu0 0.0
    %1211 = vmatpush1.msra.mxu0 %v1203
    %1212 = vmatprep.subr.mxu0 0.0
    %1213 = vmatpush1.msra.mxu0 %v1204
    %1214 = vmatprep.subr.mxu0 0.0
    %1215 = vmatpush1.msra.mxu0 %v1205
    %1216 = vmatprep.subr.mxu0 0.0
    %1217 = vmatpush1.msra.mxu0 %v1206
    %1218 = vmatprep.subr.mxu0 0.0
    %1219 = vmatpush1.msra.mxu0 0.0
    %1220 = vmatprep.subr.mxu0 0.0
    %1221 = vmatpush1.msra.mxu0 0.0
    %1222 = vmatprep.subr.mxu0 0.0
    %1223 = vmatpush1.msra.mxu0 0.0
    %1224 = vmatprep.subr.mxu0 0.0
    %1225 = vmatpush1.msra.mxu0 0.0
    %1226 = vmatprep.subr.mxu0 0.0
    %1227 = vmatpush1.msra.mxu0 0.0
    %1228 = vmatprep.subr.mxu0 0.0
    %1229 = vmatpush1.msra.mxu0 0.0
    %1230 = vmatprep.subr.mxu0 0.0
    %1231 = vmatpush1.msra.mxu0 0.0
    %1232 = vmatprep.subr.mxu0 0.0
    %1233 = vmatpush1.msra.mxu0 0.0
    %1234 = vmatprep.subr.mxu0 0.0
    %1235 = vmatpush1.msra.mxu0 0.0
    %1236 = vmatprep.subr.mxu0 0.0
    %1237 = vmatpush1.msra.mxu0 0.0
    %1238 = vmatprep.subr.mxu0 0.0
    %1239 = vmatpush1.msra.mxu0 0.0
    %1240 = vmatprep.subr.mxu0 0.0
    %1241 = vmatpush1.msra.mxu0 0.0
    %1242 = vmatprep.subr.mxu0 0.0
    %1243 = vmatpush1.msra.mxu0 0.0
    %1244 = vmatprep.subr.mxu0 0.0
    %1245 = vmatpush1.msra.mxu0 0.0
    %1246 = vmatprep.subr.mxu0 0.0
    %1247 = vmatpush1.msra.mxu0 0.0
    %1248 = vmatprep.subr.mxu0 0.0
    %1249 = vmatpush1.msra.mxu0 0.0
    %1250 = vmatprep.subr.mxu0 0.0
    %1251 = vmatpush1.msra.mxu0 0.0
    %1252 = vmatprep.subr.mxu0 0.0
    %1253 = vmatpush1.msra.mxu0 0.0
    %1254 = vmatprep.subr.mxu0 0.0
    %1255 = vmatpush1.msra.mxu0 0.0
    %1256 = vmatprep.subr.mxu0 0.0
    %1257 = vmatpush1.msra.mxu0 0.0
    %1258 = vmatprep.subr.mxu0 0.0
    %1259 = vmatpush1.msra.mxu0 0.0
    %1260 = vmatprep.subr.mxu0 0.0
    %1261 = vmatpush1.msra.mxu0 0.0
    %1262 = vmatprep.subr.mxu0 0.0
    %1263 = vmatpush1.msra.mxu0 0.0
    %1264 = vmatprep.subr.mxu0 0.0
    %1265 = vmatpush1.msra.mxu0 0.0
    %1266 = vmatprep.subr.mxu0 0.0
    %1267 = vmatpush1.msra.mxu0 0.0
    %1268 = vmatprep.subr.mxu0 0.0
    %1269 = vmatpush1.msra.mxu0 0.0
    %1270 = vmatprep.subr.mxu0 0.0
    %1271 = vmatpush1.msra.mxu0 0.0
    %1272 = vmatprep.subr.mxu0 0.0
    %1273 = vmatpush1.msra.mxu0 0.0
    %1274 = vmatprep.mubr.f32.mxu0 0.0
    %1275 = vmatmul.mubr.f32.gmra.mrb[0].mxu0 %v1208
    %v1276 = vpop.f32.mrb[0].mxu0
    %v1277 = vadd.f32 0.0, %v1276
    %v1278 = vpop.f32.mrb[0].mxu0
    %1279 = vdwg.mxu0
    %vm1280 = vcmask 48128
    %v1282 = vsel %vm1280, %v227, 0
    %vm1284 = vcmask 1045504
    %v1286 = vsel %vm1284, %v1202, 0
    %1288 = vmatprep.subr.mxu0 0.0
    %1289 = vmatpush1.msra.mxu0 %v1286
    %1290 = vmatprep.subr.mxu0 0.0
    %1291 = vmatpush1.msra.mxu0 0.0
    %1292 = vmatprep.subr.mxu0 0.0
    %1293 = vmatpush1.msra.mxu0 0.0
    %1294 = vmatprep.subr.mxu0 0.0
    %1295 = vmatpush1.msra.mxu0 0.0
    %1296 = vmatprep.subr.mxu0 0.0
    %1297 = vmatpush1.msra.mxu0 0.0
    %1298 = vmatprep.subr.mxu0 0.0
    %1299 = vmatpush1.msra.mxu0 0.0
    %1300 = vmatprep.subr.mxu0 0.0
    %1301 = vmatpush1.msra.mxu0 0.0
    %1302 = vmatprep.subr.mxu0 0.0
    %1303 = vmatpush1.msra.mxu0 0.0
    %1304 = vmatprep.subr.mxu0 0.0
    %1305 = vmatpush1.msra.mxu0 0.0
    %1306 = vmatprep.subr.mxu0 0.0
    %1307 = vmatpush1.msra.mxu0 0.0
    %1308 = vmatprep.subr.mxu0 0.0
    %1309 = vmatpush1.msra.mxu0 0.0
    %1310 = vmatprep.subr.mxu0 0.0
    %1311 = vmatpush1.msra.mxu0 0.0
    %1312 = vmatprep.subr.mxu0 0.0
    %1313 = vmatpush1.msra.mxu0 0.0
    %1314 = vmatprep.subr.mxu0 0.0
    %1315 = vmatpush1.msra.mxu0 0.0
    %1316 = vmatprep.subr.mxu0 0.0
    %1317 = vmatpush1.msra.mxu0 0.0
    %1318 = vmatprep.subr.mxu0 0.0
    %1319 = vmatpush1.msra.mxu0 0.0
    %1320 = vmatprep.subr.mxu0 0.0
    %1321 = vmatpush1.msra.mxu0 0.0
    %1322 = vmatprep.subr.mxu0 0.0
    %1323 = vmatpush1.msra.mxu0 0.0
    %1324 = vmatprep.subr.mxu0 0.0
    %1325 = vmatpush1.msra.mxu0 0.0
    %1326 = vmatprep.subr.mxu0 0.0
    %1327 = vmatpush1.msra.mxu0 0.0
    %1328 = vmatprep.subr.mxu0 0.0
    %1329 = vmatpush1.msra.mxu0 0.0
    %1330 = vmatprep.subr.mxu0 0.0
    %1331 = vmatpush1.msra.mxu0 0.0
    %1332 = vmatprep.subr.mxu0 0.0
    %1333 = vmatpush1.msra.mxu0 0.0
    %1334 = vmatprep.subr.mxu0 0.0
    %1335 = vmatpush1.msra.mxu0 0.0
    %1336 = vmatprep.subr.mxu0 0.0
    %1337 = vmatpush1.msra.mxu0 0.0
    %1338 = vmatprep.subr.mxu0 0.0
    %1339 = vmatpush1.msra.mxu0 0.0
    %1340 = vmatprep.subr.mxu0 0.0
    %1341 = vmatpush1.msra.mxu0 0.0
    %1342 = vmatprep.subr.mxu0 0.0
    %1343 = vmatpush1.msra.mxu0 0.0
    %1344 = vmatprep.subr.mxu0 0.0
    %1345 = vmatpush1.msra.mxu0 0.0
    %1346 = vmatprep.subr.mxu0 0.0
    %1347 = vmatpush1.msra.mxu0 0.0
    %1348 = vmatprep.subr.mxu0 0.0
    %1349 = vmatpush1.msra.mxu0 0.0
    %1350 = vmatprep.subr.mxu0 0.0
    %1351 = vmatpush1.msra.mxu0 0.0
    %1352 = vmatprep.mubr.f32.mxu0 0.0
    %1353 = vmatmul.mubr.f32.gmra.mrb[0].mxu0 %v1282
    %v1354 = vpop.f32.mrb[0].mxu0
    %v1355 = vadd.f32 %v1277, %v1354
    %v1356 = vpop.f32.mrb[0].mxu0
    %1357 = vdwg.mxu0
    %v1358 = vadd.f32 %v1355, %v61
    %vm1359 = vcmask 254976
    %v1360 = vsel %vm1359, %v1358, 0.0
    %1361 = vadd.xlane.f32.xlu0 %v1360
    %v1362 = vpop.xlane.xlu0 %1361
    %v1363 = vrcp.pop 32.0
    %v1364 = vmul.f32 %v1362, %v1363
    %v1365 = vsub.f32 %v1358, %v1364
    %v1366 = vmul.f32 %v1365, %v1365
    %v1367 = vsel %vm1359, %v1366, 0.0
    %1368 = vadd.xlane.f32.xlu0 %v1367
    %v1369 = vpop.xlane.xlu0 %1368
    %v1370 = vmul.f32 %v1369, %v1363
    %v1371 = vadd.f32 %v1370, 1e-05
    %v1372 = vrsqrt.pop %v1371
    %v1373 = vmul.f32 %v1365, %v1372
    %v1374 = vmul.f32 %v1373, %v62
    %v1375 = vadd.f32 %v1374, %v63
    %v1376 = vmax.f32 %v1375, 0.0
    %v1377 = vld [vmem:[%s8] sm:$0xff]
    %v1378 = vld [vmem:[%s8 + $0x8] sm:$0xff]
    %v1379 = vld [vmem:[%s8 + $0x10] sm:$0xff]
    %v1380 = vld [vmem:[%s8 + $0x18] sm:$0xff]
    %v1382 = vsel %vm897, %v1376, 0
    %1384 = vmatprep.subr.mxu0 0.0
    %1385 = vmatpush1.msra.mxu0 %v1377
    %1386 = vmatprep.subr.mxu0 0.0
    %1387 = vmatpush1.msra.mxu0 %v1378
    %1388 = vmatprep.subr.mxu0 0.0
    %1389 = vmatpush1.msra.mxu0 %v1379
    %1390 = vmatprep.subr.mxu0 0.0
    %1391 = vmatpush1.msra.mxu0 %v1380
    %1392 = vmatprep.subr.mxu0 0.0
    %1393 = vmatpush1.msra.mxu0 0.0
    %1394 = vmatprep.subr.mxu0 0.0
    %1395 = vmatpush1.msra.mxu0 0.0
    %1396 = vmatprep.subr.mxu0 0.0
    %1397 = vmatpush1.msra.mxu0 0.0
    %1398 = vmatprep.subr.mxu0 0.0
    %1399 = vmatpush1.msra.mxu0 0.0
    %1400 = vmatprep.subr.mxu0 0.0
    %1401 = vmatpush1.msra.mxu0 0.0
    %1402 = vmatprep.subr.mxu0 0.0
    %1403 = vmatpush1.msra.mxu0 0.0
    %1404 = vmatprep.subr.mxu0 0.0
    %1405 = vmatpush1.msra.mxu0 0.0
    %1406 = vmatprep.subr.mxu0 0.0
    %1407 = vmatpush1.msra.mxu0 0.0
    %1408 = vmatprep.subr.mxu0 0.0
    %1409 = vmatpush1.msra.mxu0 0.0
    %1410 = vmatprep.subr.mxu0 0.0
    %1411 = vmatpush1.msra.mxu0 0.0
    %1412 = vmatprep.subr.mxu0 0.0
    %1413 = vmatpush1.msra.mxu0 0.0
    %1414 = vmatprep.subr.mxu0 0.0
    %1415 = vmatpush1.msra.mxu0 0.0
    %1416 = vmatprep.subr.mxu0 0.0
    %1417 = vmatpush1.msra.mxu0 0.0
    %1418 = vmatprep.subr.mxu0 0.0
    %1419 = vmatpush1.msra.mxu0 0.0
    %1420 = vmatprep.subr.mxu0 0.0
    %1421 = vmatpush1.msra.mxu0 0.0
    %1422 = vmatprep.subr.mxu0 0.0
    %1423 = vmatpush1.msra.mxu0 0.0
    %1424 = vmatprep.subr.mxu0 0.0
    %1425 = vmatpush1.msra.mxu0 0.0
    %1426 = vmatprep.subr.mxu0 0.0
    %1427 = vmatpush1.msra.mxu0 0.0
    %1428 = vmatprep.subr.mxu0 0.0
    %1429 = vmatpush1.msra.mxu0 0.0
    %1430 = vmatprep.subr.mxu0 0.0
    %1431 = vmatpush1.msra.mxu0 0.0
    %1432 = vmatprep.subr.mxu0 0.0
    %1433 = vmatpush1.msra.mxu0 0.0
    %1434 = vmatprep.subr.mxu0 0.0
    %1435 = vmatpush1.msra.mxu0 0.0
    %1436 = vmatprep.subr.mxu0 0.0
    %1437 = vmatpush1.msra.mxu0 0.0
    %1438 = vmatprep.subr.mxu0 0.0
    %1439 = vmatpush1.msra.mxu0 0.0
    %1440 = vmatprep.subr.mxu0 0.0
    %1441 = vmatpush1.msra.mxu0 0.0
    %1442 = vmatprep.subr.mxu0 0.0
    %1443 = vmatpush1.msra.mxu0 0.0
    %1444 = vmatprep.subr.mxu0 0.0
    %1445 = vmatpush1.msra.mxu0 0.0
    %1446 = vmatprep.subr.mxu0 0.0
    %1447 = vmatpush1.msra.mxu0 0.0
    %1448 = vmatprep.mubr.f32.mxu0 0.0
    %1449 = vmatmul.mubr.f32.gmra.mrb[0].mxu0 %v1382
    %v1450 = vpop.f32.mrb[0].mxu0
    %v1451 = vadd.f32 %v64, %v1450
    %v1452 = vpop.f32.mrb[0].mxu0
    %1453 = vdwg.mxu0
    %v1454 = vsel %vm1359, %v1451, 0.0
    %1455 = vadd.xlane.f32.xlu0 %v1454
    %v1456 = vpop.xlane.xlu0 %1455
    %v1457 = vmul.f32 %v1456, %v1363
    %v1458 = vsub.f32 %v1451, %v1457
    %v1459 = vmul.f32 %v1458, %v1458
    %v1460 = vsel %vm1359, %v1459, 0.0
    %1461 = vadd.xlane.f32.xlu0 %v1460
    %v1462 = vpop.xlane.xlu0 %1461
    %v1463 = vmul.f32 %v1462, %v1363
    %v1464 = vadd.f32 %v1463, 1e-05
    %v1465 = vrsqrt.pop %v1464
    %v1466 = vmul.f32 %v1458, %v1465
    %v1467 = vmul.f32 %v1466, %v65
    %v1468 = vadd.f32 %v1467, %v66
    %v1469 = vmax.f32 %v1468, 0.0
    %v1470 = vld [vmem:[%s9] sm:$0xff]
    %v1471 = vld [vmem:[%s9 + $0x8] sm:$0xff]
    %v1472 = vld [vmem:[%s9 + $0x10] sm:$0xff]
    %v1473 = vld [vmem:[%s9 + $0x18] sm:$0xff]
    %v1474 = vld [vmem:[%s10] sm:$0xff]
    %1476 = vset.pattern.permute.xlu0 0
    %1477 = vperm.xlu0 %1476, %v1474
    %v1478 = vpop.permute.xlu0 %1477
    %1480 = vxpose.xlu0.b32.start [1/16] %v1470, 128
    %1481 = vxpose.xlu0.b32.cont [2/16] %v1471, 128
    %1482 = vxpose.xlu0.b32.cont [3/16] %v1472, 128
    %1483 = vxpose.xlu0.b32.cont [4/16] %v1473, 128
    %1484 = vxpose.xlu0.b32.cont [5/16] 0.0, 128
    %1485 = vxpose.xlu0.b32.cont [6/16] 0.0, 128
    %1486 = vxpose.xlu0.b32.cont [7/16] 0.0, 128
    %1487 = vxpose.xlu0.b32.cont [8/16] 0.0, 128
    %1488 = vxpose.xlu0.b32.cont [9/16] 0.0, 128
    %1489 = vxpose.xlu0.b32.cont [10/16] 0.0, 128
    %1490 = vxpose.xlu0.b32.cont [11/16] 0.0, 128
    %1491 = vxpose.xlu0.b32.cont [12/16] 0.0, 128
    %1492 = vxpose.xlu0.b32.cont [13/16] 0.0, 128
    %1493 = vxpose.xlu0.b32.cont [14/16] 0.0, 128
    %1494 = vxpose.xlu0.b32.cont [15/16] 0.0, 128
    %1495 = vxpose.xlu0.b32.end [16/16] 0.0, 128
    %v1496 = vpop.trf.xlu0
    %v1497 = vpop.trf.xlu0
    %v1498 = vpop.trf.xlu0
    %v1499 = vpop.trf.xlu0
    %v1500 = vpop.trf.xlu0
    %v1501 = vpop.trf.xlu0
    %v1502 = vpop.trf.xlu0
    %v1503 = vpop.trf.xlu0
    %v1504 = vpop.trf.xlu0
    %v1505 = vpop.trf.xlu0
    %v1506 = vpop.trf.xlu0
    %v1507 = vpop.trf.xlu0
    %v1508 = vpop.trf.xlu0
    %v1509 = vpop.trf.xlu0
    %v1510 = vpop.trf.xlu0
    %v1511 = vpop.trf.xlu0
    %v1513 = vsel %vm897, %v1496, 0
    %v1516 = vsel %vm897, %v1469, 0
    %1518 = vmatprep.subr.mxu0 0.0
    %1519 = vmatpush1.xpose.msra.mxu0 %v1516
    %1520 = vmatprep.subr.mxu0 0.0
    %1521 = vmatpush1.xpose.msra.mxu0 0.0
    %1522 = vmatprep.subr.mxu0 0.0
    %1523 = vmatpush1.xpose.msra.mxu0 0.0
    %1524 = vmatprep.subr.mxu0 0.0
    %1525 = vmatpush1.xpose.msra.mxu0 0.0
    %1526 = vmatprep.subr.mxu0 0.0
    %1527 = vmatpush1.xpose.msra.mxu0 0.0
    %1528 = vmatprep.subr.mxu0 0.0
    %1529 = vmatpush1.xpose.msra.mxu0 0.0
    %1530 = vmatprep.subr.mxu0 0.0
    %1531 = vmatpush1.xpose.msra.mxu0 0.0
    %1532 = vmatprep.subr.mxu0 0.0
    %1533 = vmatpush1.xpose.msra.mxu0 0.0
    %1534 = vmatprep.subr.mxu0 0.0
    %1535 = vmatpush1.xpose.msra.mxu0 0.0
    %1536 = vmatprep.subr.mxu0 0.0
    %1537 = vmatpush1.xpose.msra.mxu0 0.0
    %1538 = vmatprep.subr.mxu0 0.0
    %1539 = vmatpush1.xpose.msra.mxu0 0.0
    %1540 = vmatprep.subr.mxu0 0.0
    %1541 = vmatpush1.xpose.msra.mxu0 0.0
    %1542 = vmatprep.subr.mxu0 0.0
    %1543 = vmatpush1.xpose.msra.mxu0 0.0
    %1544 = vmatprep.subr.mxu0 0.0
    %1545 = vmatpush1.xpose.msra.mxu0 0.0
    %1546 = vmatprep.subr.mxu0 0.0
    %1547 = vmatpush1.xpose.msra.mxu0 0.0
    %1548 = vmatprep.subr.mxu0 0.0
    %1549 = vmatpush1.xpose.msra.mxu0 0.0
    %1550 = vmatprep.subr.mxu0 0.0
    %1551 = vmatpush1.xpose.msra.mxu0 0.0
    %1552 = vmatprep.subr.mxu0 0.0
    %1553 = vmatpush1.xpose.msra.mxu0 0.0
    %1554 = vmatprep.subr.mxu0 0.0
    %1555 = vmatpush1.xpose.msra.mxu0 0.0
    %1556 = vmatprep.subr.mxu0 0.0
    %1557 = vmatpush1.xpose.msra.mxu0 0.0
    %1558 = vmatprep.subr.mxu0 0.0
    %1559 = vmatpush1.xpose.msra.mxu0 0.0
    %1560 = vmatprep.subr.mxu0 0.0
    %1561 = vmatpush1.xpose.msra.mxu0 0.0
    %1562 = vmatprep.subr.mxu0 0.0
    %1563 = vmatpush1.xpose.msra.mxu0 0.0
    %1564 = vmatprep.subr.mxu0 0.0
    %1565 = vmatpush1.xpose.msra.mxu0 0.0
    %1566 = vmatprep.subr.mxu0 0.0
    %1567 = vmatpush1.xpose.msra.mxu0 0.0
    %1568 = vmatprep.subr.mxu0 0.0
    %1569 = vmatpush1.xpose.msra.mxu0 0.0
    %1570 = vmatprep.subr.mxu0 0.0
    %1571 = vmatpush1.xpose.msra.mxu0 0.0
    %1572 = vmatprep.subr.mxu0 0.0
    %1573 = vmatpush1.xpose.msra.mxu0 0.0
    %1574 = vmatprep.subr.mxu0 0.0
    %1575 = vmatpush1.xpose.msra.mxu0 0.0
    %1576 = vmatprep.subr.mxu0 0.0
    %1577 = vmatpush1.xpose.msra.mxu0 0.0
    %1578 = vmatprep.subr.mxu0 0.0
    %1579 = vmatpush1.xpose.msra.mxu0 0.0
    %1580 = vmatprep.subr.mxu0 0.0
    %1581 = vmatpush1.xpose.msra.mxu0 0.0
    %1582 = vmatprep.mubr.f32.mxu0 0.0
    %1583 = vmatmul.mubr.f32.gmra.mrb[0].mxu0 %v1513
    %v1584 = vpop.f32.mrb[0].mxu0
    %v1585 = vadd.f32 %v1478, %v1584
    %v1586 = vpop.f32.mrb[0].mxu0
    %1587 = vdwg.mxu0
    %v1588 = vmul.f32 %v1585, 2.0
    %v1589 = vmin.f32 %v1588, 20.0
    %v1590 = vmul.f32 %v1589, 1.442695
    %v1591 = vpow.pop %v1590
    %v1592 = vadd.f32 %v1591, 1.0
    %v1593 = vlog2.pop %v1592
    %v1594 = vmul.f32 %v1593, 0.6931472
    %v1595 = vmul.f32 %v1594, 0.5
    %vm1596 = vcmp.gt.f32.partialorder %v1588, 20.0
    %v1597 = vsel %vm1596, %v1585, %v1595
    %vm1598 = vcmask 15360
    %1599 = vst.msk [vmem:[%s12] sm:$0xff] %vm1598, %v1597
    // Predicated region
    $region54: #{conv_mlp_minsnap_forward.1} parent=1 // pred_check
      _
    $region55: #{conv_mlp_minsnap_forward.1} parent=1 // pred_check_branch
      %1601 = sbr.rel (0) target = $region57
    $region56: #{conv_mlp_minsnap_forward.1} parent=1 // pred_region
      _
    $region57: #{conv_mlp_minsnap_forward.1} parent=1 // pred_fallthru
      _
    // Predicated region
    $region58: #{conv_mlp_minsnap_forward.1} parent=1 // pred_check
      _
    $region59: #{conv_mlp_minsnap_forward.1} parent=1 // pred_check_branch
      %1603 = sbr.rel (0) target = $region61
    $region60: #{conv_mlp_minsnap_forward.1} parent=1 // pred_region
      _
    $region61: #{conv_mlp_minsnap_forward.1} parent=1 // pred_fallthru
      _
    %1604 = vsyncpa [#allocation3], 1

</llo_original>
